<compile_context>
chip_gen: v7x
topology: tpu7x:2x2x1
jax: 0.10.0
libtpu: 0.0.40
codegen_flags: <defaults>
</compile_context>

<pallas_src>
import functools
import math

import jax
import jax.numpy as jnp
from jax.experimental import pallas as pl
from jax.experimental.pallas import tpu as pltpu


def _round_up(x, m):
    return (x + m - 1) // m * m


def _device_kind():
    try:
        return jax.devices()[0].device_kind.lower()
    except Exception:
        return ""


def _vmem_capacity_bytes():
    try:
        return int(pltpu.get_tpu_info().vmem_capacity_bytes)
    except Exception:
        pass
    kind = _device_kind()
    if ("v7" in kind) or ("7x" in kind) or ("tpu7" in kind):
        return 64 * 1024 * 1024
    return 128 * 1024 * 1024


def _use_bf16_exp():
    # bf16 EUP exists on v6e/v7x; v5e only has an f32 transcendental path.
    kind = _device_kind()
    return ("v6" in kind) or ("v7" in kind) or ("7x" in kind) or ("tpu7" in kind)


def _estimate_vmem_bytes(bblk, tq, npad, cp, chp):
    f32, bf16 = 4, 2
    xq_blocks = 2 * bblk * tq * cp * f32          # double-buffered q / residual
    out_blocks = 2 * bblk * tq * cp * f32         # double-buffered output
    xkv_block = bblk * npad * cp * bf16           # Buffered(1), bf16
    pg_scratch = bblk * npad * 2 * chp * bf16     # cached phi|g projection
    weights = (cp * chp + cp * 2 * chp + chp * cp) * bf16 + (3 * chp + 2 * cp) * f32
    inter = (bblk * tq * npad * (f32 + bf16)       # sim (f32) + p (bf16)
             + bblk * tq * chp * (bf16 + f32)      # theta (bf16) + y (f32)
             + bblk * tq * cp * f32)               # out-conv result
    return xq_blocks + out_blocks + xkv_block + pg_scratch + weights + inter


def _select_tiling(b, n, cp, chp, budget):
    # Ensure >= 2 grid steps on the parallel batch axis when b >= 2 (megacore).
    cap_b = 1 if b < 2 else max(1, min(8, b // 2))
    bblk_candidates = [d for d in range(cap_b, 0, -1) if b % d == 0]
    if n <= 512:
        tq_candidates = [_round_up(n, 8)]          # single q tile, sublane aligned
    else:
        tq_candidates = [512, 384, 256, 128]       # MXU-shaped (multiples of 128)
    for bblk in bblk_candidates:
        for tq in tq_candidates:
            npad = _round_up(n, tq)
            if _estimate_vmem_bytes(bblk, tq, npad, cp, chp) <= budget:
                return bblk, tq, npad
    # TODO(synk): below this point a kv-tiled flash path is required; fall back
    # to the smallest tiling and let vmem_limit_bytes do its best.
    tq = tq_candidates[-1]
    return 1, tq, _round_up(n, tq)


def _nonlocal_kernel(xq_ref, xkv_ref, wt_ref, bt_ref, wpg_ref, bpg_ref,
                     wo_ref, shift_ref, o_ref, pg_ref, *, n_valid, bf16_exp):
    bb, tq, cp = xq_ref.shape
    _, npad, _ = xkv_ref.shape
    chp = wt_ref.shape[1]

    # phi|g projection of the bf16 key/value rows: computed once per batch
    # block (first q tile) and cached in VMEM scratch across all q tiles.
    @pl.when(pl.program_id(1) == 0)
    def _():
        xkv = xkv_ref[...].reshape(bb * npad, cp)               # already bf16
        pg = (jnp.dot(xkv, wpg_ref[...], preferred_element_type=jnp.float32)
              + bpg_ref[...])
        pg_ref[...] = pg.reshape(bb, npad, 2 * chp).astype(jnp.bfloat16)

    xq = xq_ref[...]                                            # f32 residual path
    xq_b = xq.reshape(bb * tq, cp).astype(jnp.bfloat16)

    # theta projection; the 1/sqrt(ch) attention scale is folded into wt/bt.
    theta = (jnp.dot(xq_b, wt_ref[...], preferred_element_type=jnp.float32)
             + bt_ref[...]).reshape(bb, tq, chp).astype(jnp.bfloat16)

    pg = pg_ref[...]                                            # bf16 (bb, npad, 2*chp)
    phi = pg[:, :, :chp]                                        # 128-lane aligned slices
    g = pg[:, :, chp:]

    # sim[b, i, j] = <theta_i, phi_j> — contract last dims, no transpose.
    sim = jnp.einsum('bik,bjk->bij', theta, phi,
                     preferred_element_type=jnp.float32)
    if n_valid < npad:                                          # mask padded kv rows
        kv_idx = jax.lax.broadcasted_iota(jnp.int32, sim.shape, 2)
        sim = jnp.where(kv_idx < n_valid, sim, -jnp.inf)

    # numerically stable softmax with deferred normalization
    sim = sim - jnp.max(sim, axis=-1, keepdims=True)
    if bf16_exp:                                                # v6e/v7x bf16 EUP
        p = jnp.exp(sim.astype(jnp.bfloat16))
    else:                                                       # v5e: f32 exp
        p = jnp.exp(sim)
    row_sum = jnp.sum(p, axis=-1, keepdims=True, dtype=jnp.float32)
    p = p.astype(jnp.bfloat16)

    # un-normalized p @ g, then scale the small (bb, tq, chp) result by the
    # exact row-sum reciprocal (O(tq*chp) instead of O(tq*n) VPU work).
    y = jnp.einsum('bij,bjk->bik', p, g, preferred_element_type=jnp.float32)
    y = y * pl.reciprocal(row_sum, approx=False)

    # 1x1 out-conv with the eval-mode BN scale folded into the weights.
    y = jnp.dot(y.reshape(bb * tq, chp).astype(jnp.bfloat16), wo_ref[...],
                preferred_element_type=jnp.float32).reshape(bb, tq, cp)

    # residual + folded (out_conv bias * bn_scale + bn_shift)
    o_ref[...] = xq + y + shift_ref[...]


def nonlocal_block(x_nchw, params, *, eps=1e-5):
    b, c, h, w = x_nchw.shape
    n = h * w
    ch = c // 2
    (wt, bt, wp, bp, wg, bg, wo, bo, gamma, beta, rmean, rvar) = params

    cp = _round_up(c, 128)
    chp = _round_up(ch, 128)
    inv_sqrt = 1.0 / math.sqrt(ch)

    # --- fold scales into the weights (once, in XLA, outside the kernel) ---
    wt_p = jnp.zeros((cp, chp), jnp.float32).at[:c, :ch].set(wt * inv_sqrt)
    bt_p = jnp.zeros((1, chp), jnp.float32).at[0, :ch].set(bt * inv_sqrt)

    wpg_p = jnp.zeros((cp, 2 * chp), jnp.float32)
    wpg_p = wpg_p.at[:c, :ch].set(wp).at[:c, chp:chp + ch].set(wg)
    bpg_p = jnp.zeros((1, 2 * chp), jnp.float32)
    bpg_p = bpg_p.at[0, :ch].set(bp).at[0, chp:chp + ch].set(bg)

    scale = gamma / jnp.sqrt(rvar + eps)            # eval-mode BatchNorm fold
    shift = beta - rmean * scale
    wo_eff = wo * scale[None, :]
    shift_eff = bo * scale + shift
    wo_p = jnp.zeros((chp, cp), jnp.float32).at[:ch, :c].set(wo_eff)
    shift_p = jnp.zeros((1, cp), jnp.float32).at[0, :c].set(shift_eff)

    wt_p = wt_p.astype(jnp.bfloat16)
    wpg_p = wpg_p.astype(jnp.bfloat16)
    wo_p = wo_p.astype(jnp.bfloat16)

    # --- generation-aware VMEM budget -> tiling ---
    cap = _vmem_capacity_bytes()
    vmem_limit = int(cap * 0.82)      # ~105 MiB on 128 MiB parts, ~52 MiB on v7x
    bblk, tq, npad = _select_tiling(b, n, cp, chp, vmem_limit - (4 << 20))
    grid = (b // bblk, npad // tq)

    # --- layout: NCHW -> (B, N_pad, C_pad) channels-last; bf16 kv copy ---
    x = jnp.transpose(x_nchw.reshape(b, c, n), (0, 2, 1)).astype(jnp.float32)
    if npad != n or cp != c:
        x = jnp.pad(x, ((0, 0), (0, npad - n), (0, cp - c)))
    x_kv = x.astype(jnp.bfloat16)     # largest DMA'd buffer: half the bytes

    kernel = functools.partial(_nonlocal_kernel, n_valid=n,
                               bf16_exp=_use_bf16_exp())

    out = pl.pallas_call(
        kernel,
        out_shape=jax.ShapeDtypeStruct((b, npad, cp), jnp.float32),
        grid=grid,
        in_specs=[
            pl.BlockSpec((bblk, tq, cp), lambda i, j: (i, j, 0)),     # q / residual (f32)
            pl.BlockSpec((bblk, npad, cp), lambda i, j: (i, 0, 0),
                         pipeline_mode=pl.Buffered(1)),               # k/v rows (bf16)
            pl.BlockSpec((cp, chp), lambda i, j: (0, 0),
                         pipeline_mode=pl.Buffered(1)),               # W_theta * scale
            pl.BlockSpec((1, chp), lambda i, j: (0, 0),
                         pipeline_mode=pl.Buffered(1)),               # b_theta * scale
            pl.BlockSpec((cp, 2 * chp), lambda i, j: (0, 0),
                         pipeline_mode=pl.Buffered(1)),               # W_phi | W_g
            pl.BlockSpec((1, 2 * chp), lambda i, j: (0, 0),
                         pipeline_mode=pl.Buffered(1)),               # b_phi | b_g
            pl.BlockSpec((chp, cp), lambda i, j: (0, 0),
                         pipeline_mode=pl.Buffered(1)),               # W_out * bn_scale
            pl.BlockSpec((1, cp), lambda i, j: (0, 0),
                         pipeline_mode=pl.Buffered(1)),               # folded shift
        ],
        out_specs=pl.BlockSpec((bblk, tq, cp), lambda i, j: (i, j, 0)),
        scratch_shapes=[pltpu.VMEM((bblk, npad, 2 * chp), jnp.bfloat16)],
        compiler_params=pltpu.CompilerParams(
            dimension_semantics=("parallel", "arbitrary"),
            vmem_limit_bytes=vmem_limit),
    )(x, x_kv, wt_p, bt_p, wpg_p, bpg_p, wo_p, shift_p)

    out = out[:, :n, :c]              # drop padded rows / channels
    return jnp.transpose(out, (0, 2, 1)).reshape(b, c, h, w)


def _reference(x_nchw, params):
    """Pure-JAX f32 reference mirroring the PyTorch forward (eval-mode BN)."""
    (wt, bt, wp, bp, wg, bg, wo, bo, gamma, beta, rmean, rvar) = params
    b, c, h, w = x_nchw.shape
    n = h * w
    ch = c // 2
    x = jnp.transpose(x_nchw.reshape(b, c, n), (0, 2, 1))      # (b, n, c)
    theta = x @ wt + bt                                        # (b, n, ch)
    phi = x @ wp + bp                                          # (b, n, ch)
    g = x @ wg + bg                                            # (b, n, ch)
    sim = jnp.einsum('bik,bjk->bij', theta, phi) / math.sqrt(ch)
    attn = jax.nn.softmax(sim, axis=-1)
    y = jnp.einsum('bij,bjk->bik', attn, g)                    # (b, n, ch)
    y = y @ wo + bo                                            # (b, n, c)
    eps = 1e-5
    y = (y - rmean) / jnp.sqrt(rvar + eps) * gamma + beta
    out = x + y
    return jnp.transpose(out, (0, 2, 1)).reshape(b, c, h, w)


def make_params(key, c):
    ch = c // 2
    keys = jax.random.split(key, 12)
    s = 0.1
    # conv weights stored as (Cin, Cout) for channels-last matmul
    wt = jax.random.normal(keys[0], (c, ch), jnp.float32) * s
    bt = jax.random.normal(keys[1], (ch,), jnp.float32) * s
    wp = jax.random.normal(keys[2], (c, ch), jnp.float32) * s
    bp = jax.random.normal(keys[3], (ch,), jnp.float32) * s
    wg = jax.random.normal(keys[4], (c, ch), jnp.float32) * s
    bg = jax.random.normal(keys[5], (ch,), jnp.float32) * s
    wo = jax.random.normal(keys[6], (ch, c), jnp.float32) * s
    bo = jax.random.normal(keys[7], (c,), jnp.float32) * s
    gamma = 1.0 + jax.random.normal(keys[8], (c,), jnp.float32) * s
    beta = jax.random.normal(keys[9], (c,), jnp.float32) * s
    rmean = jax.random.normal(keys[10], (c,), jnp.float32) * s
    rvar = 1.0 + jax.random.uniform(keys[11], (c,), jnp.float32) * s
    return (wt, bt, wp, bp, wg, bg, wo, bo, gamma, beta, rmean, rvar)


if __name__ == "__main__":
    key = jax.random.PRNGKey(0)
    kx, kp = jax.random.split(key)

    B, C, H, W = 2, 64, 8, 8           # in_channels=64, N = H*W = 64
    x = jax.random.normal(kx, (B, C, H, W), jnp.float32)
    params = make_params(kp, C)

    out = jax.block_until_ready(nonlocal_block(x, params))
    ref = _reference(x, params)

    assert out.shape == (B, C, H, W)
    # bf16 MXU operands / bf16 exp -> slightly looser tolerance vs f32 reference
    assert jnp.allclose(out, ref, atol=3e-2, rtol=3e-2), "mismatch vs reference"

    print("KERNEL_OK")
</pallas_src>

<mosaic_0001>
module attributes {stable_mosaic.version = 11 : i64} {
  func.func @_nonlocal_kernel(%arg0: i32, %arg1: i32, %arg2: memref<1x64x128xf32, #tpu.memory_space<vmem>>, %arg3: memref<1x64x128xbf16, #tpu.memory_space<vmem>>, %arg4: memref<128x128xbf16, #tpu.memory_space<vmem>>, %arg5: memref<1x128xf32, #tpu.memory_space<vmem>>, %arg6: memref<128x256xbf16, #tpu.memory_space<vmem>>, %arg7: memref<1x256xf32, #tpu.memory_space<vmem>>, %arg8: memref<128x128xbf16, #tpu.memory_space<vmem>>, %arg9: memref<1x128xf32, #tpu.memory_space<vmem>>, %arg10: memref<1x64x128xf32, #tpu.memory_space<vmem>>, %arg11: memref<1x64x256xbf16, #tpu.memory_space<vmem>>) attributes {dimension_semantics = [#tpu.dimension_semantics<parallel>, #tpu.dimension_semantics<arbitrary>], iteration_bounds = array<i64: 2, 1>, scalar_prefetch = 0 : i64, scratch_operands = 1 : i64, tpu.core_type = #tpu.core_type<tc>, window_params = [{transform_indices = @transform_0, window_bounds = array<i64: 1, 64, 128>}, {pipeline_mode = #tpu.pipeline_mode<synchronous>, transform_indices = @transform_1, window_bounds = array<i64: 1, 64, 128>}, {pipeline_mode = #tpu.pipeline_mode<synchronous>, transform_indices = @transform_2, window_bounds = array<i64: 128, 128>}, {pipeline_mode = #tpu.pipeline_mode<synchronous>, transform_indices = @transform_3, window_bounds = array<i64: 1, 128>}, {pipeline_mode = #tpu.pipeline_mode<synchronous>, transform_indices = @transform_4, window_bounds = array<i64: 128, 256>}, {pipeline_mode = #tpu.pipeline_mode<synchronous>, transform_indices = @transform_5, window_bounds = array<i64: 1, 256>}, {pipeline_mode = #tpu.pipeline_mode<synchronous>, transform_indices = @transform_6, window_bounds = array<i64: 128, 128>}, {pipeline_mode = #tpu.pipeline_mode<synchronous>, transform_indices = @transform_7, window_bounds = array<i64: 1, 128>}, {transform_indices = @transform_8, window_bounds = array<i64: 1, 64, 128>}]} {
    %c0_i32 = arith.constant 0 : i32
    %0 = arith.cmpi eq, %arg1, %c0_i32 : i32
    %1 = arith.extui %0 : i1 to i32
    %c0_i32_0 = arith.constant 0 : i32
    %2 = arith.cmpi ne, %1, %c0_i32_0 : i32
    scf.if %2 {
      %c0_22 = arith.constant 0 : index
      %c0_23 = arith.constant 0 : index
      %c0_24 = arith.constant 0 : index
      %40 = vector.load %arg3[%c0_22, %c0_23, %c0_24] : memref<1x64x128xbf16, #tpu.memory_space<vmem>>, vector<1x64x128xbf16>
      %41 = vector.shape_cast %40 : vector<1x64x128xbf16> to vector<64x128xbf16>
      %c0_25 = arith.constant 0 : index
      %c0_26 = arith.constant 0 : index
      %42 = vector.load %arg6[%c0_25, %c0_26] : memref<128x256xbf16, #tpu.memory_space<vmem>>, vector<128x256xbf16>
      %cst_27 = arith.constant dense<0.000000e+00> : vector<64x256xf32>
      %43 = tpu.matmul %41, %42, %cst_27 {dimension_numbers = #tpu.dot_dimension_numbers<[1], [0], [0], [1], [0, 0, 1, 1], [], []>} : vector<64x128xbf16>, vector<128x256xbf16>, vector<64x256xf32> -> vector<64x256xf32>
      %c0_28 = arith.constant 0 : index
      %c0_29 = arith.constant 0 : index
      %44 = vector.load %arg7[%c0_28, %c0_29] : memref<1x256xf32, #tpu.memory_space<vmem>>, vector<1x256xf32>
      %45 = vector.broadcast %44 : vector<1x256xf32> to vector<64x256xf32>
      %46 = arith.addf %43, %45 : vector<64x256xf32>
      %47 = vector.shape_cast %46 : vector<64x256xf32> to vector<1x64x256xf32>
      %48 = arith.truncf %47 : vector<1x64x256xf32> to vector<1x64x256xbf16>
      %c0_30 = arith.constant 0 : index
      %c0_31 = arith.constant 0 : index
      %c0_32 = arith.constant 0 : index
      %49 = vector.load %arg11[%c0_30, %c0_31, %c0_32] : memref<1x64x256xbf16, #tpu.memory_space<vmem>>, vector<1x64x256xbf16>
      tpu.vector_store %arg11[%c0_30, %c0_31, %c0_32], %48 {strides = array<i32>} : memref<1x64x256xbf16, #tpu.memory_space<vmem>>, vector<1x64x256xbf16>,
    } else {
    }
    %c0 = arith.constant 0 : index
    %c0_1 = arith.constant 0 : index
    %c0_2 = arith.constant 0 : index
    %3 = vector.load %arg2[%c0, %c0_1, %c0_2] : memref<1x64x128xf32, #tpu.memory_space<vmem>>, vector<1x64x128xf32>
    %4 = vector.shape_cast %3 : vector<1x64x128xf32> to vector<64x128xf32>
    %5 = arith.truncf %4 : vector<64x128xf32> to vector<64x128xbf16>
    %c0_3 = arith.constant 0 : index
    %c0_4 = arith.constant 0 : index
    %6 = vector.load %arg4[%c0_3, %c0_4] : memref<128x128xbf16, #tpu.memory_space<vmem>>, vector<128x128xbf16>
    %cst = arith.constant dense<0.000000e+00> : vector<64x128xf32>
    %7 = tpu.matmul %5, %6, %cst {dimension_numbers = #tpu.dot_dimension_numbers<[1], [0], [0], [1], [0, 0, 1, 1], [], []>} : vector<64x128xbf16>, vector<128x128xbf16>, vector<64x128xf32> -> vector<64x128xf32>
    %c0_5 = arith.constant 0 : index
    %c0_6 = arith.constant 0 : index
    %8 = vector.load %arg5[%c0_5, %c0_6] : memref<1x128xf32, #tpu.memory_space<vmem>>, vector<1x128xf32>
    %9 = vector.broadcast %8 : vector<1x128xf32> to vector<64x128xf32>
    %10 = arith.addf %7, %9 : vector<64x128xf32>
    %11 = vector.shape_cast %10 : vector<64x128xf32> to vector<1x64x128xf32>
    %12 = arith.truncf %11 : vector<1x64x128xf32> to vector<1x64x128xbf16>
    %c0_7 = arith.constant 0 : index
    %c0_8 = arith.constant 0 : index
    %c0_9 = arith.constant 0 : index
    %13 = vector.load %arg11[%c0_7, %c0_8, %c0_9] : memref<1x64x256xbf16, #tpu.memory_space<vmem>>, vector<1x64x256xbf16>
    %14 = vector.extract_strided_slice %13 {offsets = [0, 0, 0], sizes = [1, 64, 128], strides = [1, 1, 1]} : vector<1x64x256xbf16> to vector<1x64x128xbf16>
    %15 = vector.extract_strided_slice %13 {offsets = [0, 0, 128], sizes = [1, 64, 128], strides = [1, 1, 1]} : vector<1x64x256xbf16> to vector<1x64x128xbf16>
    "tpu.trace_start"() <{level = 10 : i32, message = "bik,bjk->bij"}> : () -> ()
    %cst_10 = arith.constant dense<0.000000e+00> : vector<1x64x64xf32>
    %16 = tpu.matmul %12, %14, %cst_10 {dimension_numbers = #tpu.dot_dimension_numbers<[2], [2], [1], [1], [0, 0, 0, 1, 1, 1], [0], [0]>} : vector<1x64x128xbf16>, vector<1x64x128xbf16>, vector<1x64x64xf32> -> vector<1x64x64xf32>
    "tpu.trace_stop"() : () -> ()
    %cst_11 = arith.constant dense<0xFF800000> : vector<1x64xf32>
    %17 = vector.multi_reduction <maximumf>, %16, %cst_11 [2] : vector<1x64x64xf32> to vector<1x64xf32>
    %18 = vector.shape_cast %17 : vector<1x64xf32> to vector<1x64x1xf32>
    %19 = vector.broadcast %18 : vector<1x64x1xf32> to vector<1x64x64xf32>
    %20 = arith.subf %16, %19 : vector<1x64x64xf32>
    %21 = math.exp %20 : vector<1x64x64xf32>
    %cst_12 = arith.constant dense<0.000000e+00> : vector<1x64xf32>
    %22 = vector.multi_reduction <add>, %21, %cst_12 [2] : vector<1x64x64xf32> to vector<1x64xf32>
    %23 = vector.shape_cast %22 : vector<1x64xf32> to vector<1x64x1xf32>
    %24 = arith.truncf %21 : vector<1x64x64xf32> to vector<1x64x64xbf16>
    "tpu.trace_start"() <{level = 10 : i32, message = "bij,bjk->bik"}> : () -> ()
    %cst_13 = arith.constant dense<0.000000e+00> : vector<1x64x128xf32>
    %25 = tpu.matmul %24, %15, %cst_13 {dimension_numbers = #tpu.dot_dimension_numbers<[2], [1], [1], [2], [0, 0, 0, 1, 1, 2], [0], [0]>} : vector<1x64x64xbf16>, vector<1x64x128xbf16>, vector<1x64x128xf32> -> vector<1x64x128xf32>
    "tpu.trace_stop"() : () -> ()
    %26 = tpu.reciprocal %23 : vector<1x64x1xf32> -> vector<1x64x1xf32>
    %27 = vector.broadcast %26 : vector<1x64x1xf32> to vector<1x64x128xf32>
    %28 = arith.mulf %25, %27 : vector<1x64x128xf32>
    %29 = vector.shape_cast %28 : vector<1x64x128xf32> to vector<64x128xf32>
    %30 = arith.truncf %29 : vector<64x128xf32> to vector<64x128xbf16>
    %c0_14 = arith.constant 0 : index
    %c0_15 = arith.constant 0 : index
    %31 = vector.load %arg8[%c0_14, %c0_15] : memref<128x128xbf16, #tpu.memory_space<vmem>>, vector<128x128xbf16>
    %cst_16 = arith.constant dense<0.000000e+00> : vector<64x128xf32>
    %32 = tpu.matmul %30, %31, %cst_16 {dimension_numbers = #tpu.dot_dimension_numbers<[1], [0], [0], [1], [0, 0, 1, 1], [], []>} : vector<64x128xbf16>, vector<128x128xbf16>, vector<64x128xf32> -> vector<64x128xf32>
    %33 = vector.shape_cast %32 : vector<64x128xf32> to vector<1x64x128xf32>
    %34 = arith.addf %3, %33 : vector<1x64x128xf32>
    %c0_17 = arith.constant 0 : index
    %c0_18 = arith.constant 0 : index
    %35 = vector.load %arg9[%c0_17, %c0_18] : memref<1x128xf32, #tpu.memory_space<vmem>>, vector<1x128xf32>
    %36 = vector.shape_cast %35 : vector<1x128xf32> to vector<1x1x128xf32>
    %37 = vector.broadcast %36 : vector<1x1x128xf32> to vector<1x64x128xf32>
    %38 = arith.addf %34, %37 : vector<1x64x128xf32>
    %c0_19 = arith.constant 0 : index
    %c0_20 = arith.constant 0 : index
    %c0_21 = arith.constant 0 : index
    %39 = vector.load %arg10[%c0_19, %c0_20, %c0_21] : memref<1x64x128xf32, #tpu.memory_space<vmem>>, vector<1x64x128xf32>
    tpu.vector_store %arg10[%c0_19, %c0_20, %c0_21], %38 {strides = array<i32>} : memref<1x64x128xf32, #tpu.memory_space<vmem>>, vector<1x64x128xf32>,
    return
  }
  func.func @transform_0(%arg0: i32, %arg1: i32) -> (i32, i32, i32) {
    %c0_i32 = arith.constant 0 : i32
    %c0_i32_0 = arith.constant 0 : i32
    return %arg0, %arg1, %c0_i32 : i32, i32, i32
  }
  func.func @transform_1(%arg0: i32, %arg1: i32) -> (i32, i32, i32) {
    %c0_i32 = arith.constant 0 : i32
    %c0_i32_0 = arith.constant 0 : i32
    %c0_i32_1 = arith.constant 0 : i32
    return %arg0, %c0_i32, %c0_i32_0 : i32, i32, i32
  }
  func.func @transform_2(%arg0: i32, %arg1: i32) -> (i32, i32) {
    %c0_i32 = arith.constant 0 : i32
    %c0_i32_0 = arith.constant 0 : i32
    %c0_i32_1 = arith.constant 0 : i32
    return %c0_i32, %c0_i32_0 : i32, i32
  }
  func.func @transform_3(%arg0: i32, %arg1: i32) -> (i32, i32) {
    %c0_i32 = arith.constant 0 : i32
    %c0_i32_0 = arith.constant 0 : i32
    %c0_i32_1 = arith.constant 0 : i32
    return %c0_i32, %c0_i32_0 : i32, i32
  }
  func.func @transform_4(%arg0: i32, %arg1: i32) -> (i32, i32) {
    %c0_i32 = arith.constant 0 : i32
    %c0_i32_0 = arith.constant 0 : i32
    %c0_i32_1 = arith.constant 0 : i32
    return %c0_i32, %c0_i32_0 : i32, i32
  }
  func.func @transform_5(%arg0: i32, %arg1: i32) -> (i32, i32) {
    %c0_i32 = arith.constant 0 : i32
    %c0_i32_0 = arith.constant 0 : i32
    %c0_i32_1 = arith.constant 0 : i32
    return %c0_i32, %c0_i32_0 : i32, i32
  }
  func.func @transform_6(%arg0: i32, %arg1: i32) -> (i32, i32) {
    %c0_i32 = arith.constant 0 : i32
    %c0_i32_0 = arith.constant 0 : i32
    %c0_i32_1 = arith.constant 0 : i32
    return %c0_i32, %c0_i32_0 : i32, i32
  }
  func.func @transform_7(%arg0: i32, %arg1: i32) -> (i32, i32) {
    %c0_i32 = arith.constant 0 : i32
    %c0_i32_0 = arith.constant 0 : i32
    %c0_i32_1 = arith.constant 0 : i32
    return %c0_i32, %c0_i32_0 : i32, i32
  }
  func.func @transform_8(%arg0: i32, %arg1: i32) -> (i32, i32, i32) {
    %c0_i32 = arith.constant 0 : i32
    %c0_i32_0 = arith.constant 0 : i32
    return %arg0, %arg1, %c0_i32 : i32, i32, i32
  }
}

</mosaic_0001>

<llo_original>
// kernel: tpu_custom_call.1
$region0: #{tpu_custom_call.1}
  #allocation0 [shape = 'u32[]', space=smem, size = 0x4, offset = 0x4, fixed_abs, tag = 'smem constant byte address 0x4 - core index']
  #allocation1 [shape = 'u32[144,128]{1,0:T(1,128)}', space=vmem, size = 0x12000, scoped, tag = 'internal scratch']
  #allocation2 [shape = 'bf16[1,64,256]{2,1,0:T(16,128)(2,1)}', space=vmem, size = 0x8000, scoped, tag = 'scratch operand']
  %s0 = inlined_call_operand.hbm [shape: f32[2,64,128], index: 0, kind: input, shape index: {}]
  %s1 = inlined_call_operand.hbm [shape: bf16[2,64,128], index: 1, kind: input, shape index: {}]
  %s2 = inlined_call_operand.hbm [shape: bf16[128,128], index: 2, kind: input, shape index: {}]
  %s3 = inlined_call_operand.hbm [shape: f32[1,128], index: 3, kind: input, shape index: {}]
  %s4 = inlined_call_operand.hbm [shape: bf16[128,256], index: 4, kind: input, shape index: {}]
  %s5 = inlined_call_operand.hbm [shape: f32[1,256], index: 5, kind: input, shape index: {}]
  %s6 = inlined_call_operand.hbm [shape: bf16[128,128], index: 6, kind: input, shape index: {}]
  %s7 = inlined_call_operand.hbm [shape: f32[1,128], index: 7, kind: input, shape index: {}]
  %s8 = inlined_call_operand.hbm [shape: f32[2,64,128], index: 8, kind: output, shape index: {}]
  %s9 = sld [smem:[#allocation0]]
  $region101: #{tpu_custom_call.1} parent=0
    _
  %s11 = ssub.s32 1, %s9
  %s12 = scalar_select 0, %s11, %s9
  $region1: #{tpu_custom_call.1} parent=0
    #allocation3 [shape = 'u8[65536]{0}', space=vmem, size = 0x10000, scoped, tag = 'input window, operand 0']
    #allocation4 [shape = 's32[2]{0}', space=sflag, size = 0x8, scoped, tag = 'scoped memory for tpu_custom_call.1']
    #allocation5 [shape = 's32[2]{0}', space=sflag, size = 0x8, scoped, tag = 'scoped memory for tpu_custom_call.1']
    #allocation6 [shape = 'u8[16384]{0}', space=vmem, size = 0x4000, scoped, tag = 'input window, operand 1, single buffered']
    #allocation7 [shape = 's32[1]{0}', space=sflag, size = 0x4, scoped, tag = 'scoped memory for tpu_custom_call.1']
    #allocation8 [shape = 'u8[32768]{0}', space=vmem, size = 0x8000, scoped, tag = 'input window, operand 2, single buffered']
    #allocation9 [shape = 'u8[512]{0}', space=vmem, size = 0x400, scoped, tag = 'input window, operand 3, single buffered']
    #allocation10 [shape = 's32[1]{0}', space=sflag, size = 0x4, scoped, tag = 'scoped memory for tpu_custom_call.1']
    #allocation11 [shape = 'u8[65536]{0}', space=vmem, size = 0x10000, scoped, tag = 'input window, operand 4, single buffered']
    #allocation12 [shape = 'u8[1024]{0}', space=vmem, size = 0x400, scoped, tag = 'input window, operand 5, single buffered']
    #allocation13 [shape = 's32[1]{0}', space=sflag, size = 0x4, scoped, tag = 'scoped memory for tpu_custom_call.1']
    #allocation14 [shape = 'u8[32768]{0}', space=vmem, size = 0x8000, scoped, tag = 'input window, operand 6, single buffered']
    #allocation15 [shape = 'u8[512]{0}', space=vmem, size = 0x400, scoped, tag = 'input window, operand 7, single buffered']
    #allocation16 [shape = 's32[1]{0}', space=sflag, size = 0x4, scoped, tag = 'scoped memory for tpu_custom_call.1']
    #allocation17 [shape = 'u8[65536]{0}', space=vmem, size = 0x10000, scoped, tag = 'output window, operand 0']
    %13 = vsyncpa [#allocation4], 0
    %s14 = scalar_lea.sflag [#allocation4], 1
    %15 = vsyncpa %s14, 0
    %16 = vsyncpa [#allocation7], 0
    %17 = vsyncpa [#allocation10], 0
    %18 = vsyncpa [#allocation13], 0
    %19 = vsyncpa [#allocation16], 0
    %20 = vsyncpa [#allocation5], 0
    %s21 = scalar_lea.sflag [#allocation5], 1
    %22 = vsyncpa %s21, 0
    loop: start=0, step=1, limit=4
    $region2: #{tpu_custom_call.1} parent=1 // loop_pre_header
      _
    $region3: #{tpu_custom_call.1} parent=1 // loop_header
      %s24 = sphi 0, %s28
      %p25 = scmp.ge.s32.totalorder %s24, 4
      %s31 = sphi 0, %s43
      %s32 = sphi 0, %s39
      %s33 = sphi 0, %s31
      %s34 = sphi 0, %s32
      %s35 = sphi 0, %s33
      %s36 = sphi 0, %s34
      %s48 = sphi 0, %s50
      %s51 = sphi 0, %s48
      %s52 = sphi 0, %s51
      %s68 = sphi 0, %s52
      %s74 = sphi 0, %s76
      %s77 = sphi 0, %s74
      %s78 = sphi 0, %s77
      %s94 = sphi 0, %s78
      %s98 = sphi 0, %s98
      %s100 = sphi 0, %s98
      %s101 = sphi 0, %s100
      %s115 = sphi 0, %s101
      %s119 = sphi 0, %s119
      %s121 = sphi 0, %s119
      %s122 = sphi 0, %s121
      %s136 = sphi 0, %s122
      %s140 = sphi 0, %s140
      %s142 = sphi 0, %s140
      %s143 = sphi 0, %s142
      %s157 = sphi 0, %s143
      %s161 = sphi 0, %s161
      %s163 = sphi 0, %s161
      %s164 = sphi 0, %s163
      %s178 = sphi 0, %s164
      %s182 = sphi 0, %s182
      %s184 = sphi 0, %s182
      %s185 = sphi 0, %s184
      %s199 = sphi 0, %s185
      %s203 = sphi 0, %s203
      %s205 = sphi 0, %s203
      %s206 = sphi 0, %s205
      %s220 = sphi 0, %s206
      %s228 = sphi 0, %s230
      %s231 = sphi 0, %s228
      %s232 = sphi 0, %s231
      %s248 = sphi 0, %s232
    $region4: #{tpu_custom_call.1} parent=1 // loop_header_branch
      %27 = sbr.rel (%p25) target = $region8
    $region5: #{tpu_custom_call.1} parent=1 // loop_body
      %s29 = ssub.s32 %s24, 1
      %s30 = ssub.s32 %s24, 2
      %s37 = sadd.s32 1, %s32
      %p38 = scmp.ge.s32.totalorder %s37, 1
      %s39 = scalar_select %p38, 0, %s37
      %s40 = sadd.s32 1, %s31
      %s41 = scalar_select %p38, %s40, %s31
      %p42 = scmp.ge.s32.totalorder %s41, 2
      %s43 = scalar_select %p42, 0, %s41
      %s44 = ssub.s32 %s31, %s43
      %s45 = ssub.s32 %s32, %s39
      %s46 = sor.u32 %s44, %s45
      %p47 = scmp.eq.s32.totalorder %s46, 0
      %s49 = sadd.s32 %s48, 1
      %s50 = scalar_select %p47, %s48, %s49
      %p53 = pneg %p47
      %p54 = scmp.eq.s32.totalorder %s24, 1
      %p55 = por %p53, %p54
      %p56 = scmp.ne.s32.totalorder %s48, %s51
      %p57 = scmp.eq.s32.totalorder %s24, 0
      %p58 = por %p56, %p57
      %p59 = scmp.ne.s32.totalorder %s48, %s51
      %p60 = scmp.eq.s32.totalorder %s29, 1
      %p61 = por %p59, %p60
      %p62 = scmp.ne.s32.totalorder %s51, %s52
      %p63 = scmp.eq.s32.totalorder %s29, 0
      %p64 = por %p62, %p63
      %p65 = scmp.ne.s32.totalorder %s51, %s52
      %p66 = scmp.eq.s32.totalorder %s30, 1
      %p67 = por %p65, %p66
      %p69 = scmp.ne.s32.totalorder %s52, %s68
      %p70 = scmp.eq.s32.totalorder %s30, 0
      %p71 = por %p69, %p70
      %s72 = ssub.s32 %s31, %s43
      %p73 = scmp.eq.s32.totalorder %s72, 0
      %s75 = sadd.s32 %s74, 1
      %s76 = scalar_select %p73, %s74, %s75
      %p79 = pneg %p73
      %p80 = scmp.eq.s32.totalorder %s24, 1
      %p81 = por %p79, %p80
      %p82 = scmp.ne.s32.totalorder %s74, %s77
      %p83 = scmp.eq.s32.totalorder %s24, 0
      %p84 = por %p82, %p83
      %p85 = scmp.ne.s32.totalorder %s74, %s77
      %p86 = scmp.eq.s32.totalorder %s29, 1
      %p87 = por %p85, %p86
      %p88 = scmp.ne.s32.totalorder %s77, %s78
      %p89 = scmp.eq.s32.totalorder %s29, 0
      %p90 = por %p88, %p89
      %p91 = scmp.ne.s32.totalorder %s77, %s78
      %p92 = scmp.eq.s32.totalorder %s30, 1
      %p93 = por %p91, %p92
      %p95 = scmp.ne.s32.totalorder %s78, %s94
      %p96 = scmp.eq.s32.totalorder %s30, 0
      %p97 = por %p95, %p96
      %s99 = sadd.s32 %s98, 1
      %p102 = scmp.eq.s32.totalorder %s24, 1
      %p103 = scmp.ne.s32.totalorder %s98, %s100
      %p104 = scmp.eq.s32.totalorder %s24, 0
      %p105 = por %p103, %p104
      %p106 = scmp.ne.s32.totalorder %s98, %s100
      %p107 = scmp.eq.s32.totalorder %s29, 1
      %p108 = por %p106, %p107
      %p109 = scmp.ne.s32.totalorder %s100, %s101
      %p110 = scmp.eq.s32.totalorder %s29, 0
      %p111 = por %p109, %p110
      %p112 = scmp.ne.s32.totalorder %s100, %s101
      %p113 = scmp.eq.s32.totalorder %s30, 1
      %p114 = por %p112, %p113
      %p116 = scmp.ne.s32.totalorder %s101, %s115
      %p117 = scmp.eq.s32.totalorder %s30, 0
      %p118 = por %p116, %p117
      %s120 = sadd.s32 %s119, 1
      %p123 = scmp.eq.s32.totalorder %s24, 1
      %p124 = scmp.ne.s32.totalorder %s119, %s121
      %p125 = scmp.eq.s32.totalorder %s24, 0
      %p126 = por %p124, %p125
      %p127 = scmp.ne.s32.totalorder %s119, %s121
      %p128 = scmp.eq.s32.totalorder %s29, 1
      %p129 = por %p127, %p128
      %p130 = scmp.ne.s32.totalorder %s121, %s122
      %p131 = scmp.eq.s32.totalorder %s29, 0
      %p132 = por %p130, %p131
      %p133 = scmp.ne.s32.totalorder %s121, %s122
      %p134 = scmp.eq.s32.totalorder %s30, 1
      %p135 = por %p133, %p134
      %p137 = scmp.ne.s32.totalorder %s122, %s136
      %p138 = scmp.eq.s32.totalorder %s30, 0
      %p139 = por %p137, %p138
      %s141 = sadd.s32 %s140, 1
      %p144 = scmp.eq.s32.totalorder %s24, 1
      %p145 = scmp.ne.s32.totalorder %s140, %s142
      %p146 = scmp.eq.s32.totalorder %s24, 0
      %p147 = por %p145, %p146
      %p148 = scmp.ne.s32.totalorder %s140, %s142
      %p149 = scmp.eq.s32.totalorder %s29, 1
      %p150 = por %p148, %p149
      %p151 = scmp.ne.s32.totalorder %s142, %s143
      %p152 = scmp.eq.s32.totalorder %s29, 0
      %p153 = por %p151, %p152
      %p154 = scmp.ne.s32.totalorder %s142, %s143
      %p155 = scmp.eq.s32.totalorder %s30, 1
      %p156 = por %p154, %p155
      %p158 = scmp.ne.s32.totalorder %s143, %s157
      %p159 = scmp.eq.s32.totalorder %s30, 0
      %p160 = por %p158, %p159
      %s162 = sadd.s32 %s161, 1
      %p165 = scmp.eq.s32.totalorder %s24, 1
      %p166 = scmp.ne.s32.totalorder %s161, %s163
      %p167 = scmp.eq.s32.totalorder %s24, 0
      %p168 = por %p166, %p167
      %p169 = scmp.ne.s32.totalorder %s161, %s163
      %p170 = scmp.eq.s32.totalorder %s29, 1
      %p171 = por %p169, %p170
      %p172 = scmp.ne.s32.totalorder %s163, %s164
      %p173 = scmp.eq.s32.totalorder %s29, 0
      %p174 = por %p172, %p173
      %p175 = scmp.ne.s32.totalorder %s163, %s164
      %p176 = scmp.eq.s32.totalorder %s30, 1
      %p177 = por %p175, %p176
      %p179 = scmp.ne.s32.totalorder %s164, %s178
      %p180 = scmp.eq.s32.totalorder %s30, 0
      %p181 = por %p179, %p180
      %s183 = sadd.s32 %s182, 1
      %p186 = scmp.eq.s32.totalorder %s24, 1
      %p187 = scmp.ne.s32.totalorder %s182, %s184
      %p188 = scmp.eq.s32.totalorder %s24, 0
      %p189 = por %p187, %p188
      %p190 = scmp.ne.s32.totalorder %s182, %s184
      %p191 = scmp.eq.s32.totalorder %s29, 1
      %p192 = por %p190, %p191
      %p193 = scmp.ne.s32.totalorder %s184, %s185
      %p194 = scmp.eq.s32.totalorder %s29, 0
      %p195 = por %p193, %p194
      %p196 = scmp.ne.s32.totalorder %s184, %s185
      %p197 = scmp.eq.s32.totalorder %s30, 1
      %p198 = por %p196, %p197
      %p200 = scmp.ne.s32.totalorder %s185, %s199
      %p201 = scmp.eq.s32.totalorder %s30, 0
      %p202 = por %p200, %p201
      %s204 = sadd.s32 %s203, 1
      %p207 = scmp.eq.s32.totalorder %s24, 1
      %p208 = scmp.ne.s32.totalorder %s203, %s205
      %p209 = scmp.eq.s32.totalorder %s24, 0
      %p210 = por %p208, %p209
      %p211 = scmp.ne.s32.totalorder %s203, %s205
      %p212 = scmp.eq.s32.totalorder %s29, 1
      %p213 = por %p211, %p212
      %p214 = scmp.ne.s32.totalorder %s205, %s206
      %p215 = scmp.eq.s32.totalorder %s29, 0
      %p216 = por %p214, %p215
      %p217 = scmp.ne.s32.totalorder %s205, %s206
      %p218 = scmp.eq.s32.totalorder %s30, 1
      %p219 = por %p217, %p218
      %p221 = scmp.ne.s32.totalorder %s206, %s220
      %p222 = scmp.eq.s32.totalorder %s30, 0
      %p223 = por %p221, %p222
      %s224 = ssub.s32 %s31, %s43
      %s225 = ssub.s32 %s32, %s39
      %s226 = sor.u32 %s224, %s225
      %p227 = scmp.eq.s32.totalorder %s226, 0
      %s229 = sadd.s32 %s228, 1
      %s230 = scalar_select %p227, %s228, %s229
      %p233 = pneg %p227
      %p234 = scmp.eq.s32.totalorder %s24, 1
      %p235 = por %p233, %p234
      %p236 = scmp.ne.s32.totalorder %s228, %s231
      %p237 = scmp.eq.s32.totalorder %s24, 0
      %p238 = por %p236, %p237
      %p239 = scmp.ne.s32.totalorder %s228, %s231
      %p240 = scmp.eq.s32.totalorder %s29, 1
      %p241 = por %p239, %p240
      %p242 = scmp.ne.s32.totalorder %s231, %s232
      %p243 = scmp.eq.s32.totalorder %s29, 0
      %p244 = por %p242, %p243
      %p245 = scmp.ne.s32.totalorder %s231, %s232
      %p246 = scmp.eq.s32.totalorder %s30, 1
      %p247 = por %p245, %p246
      %p249 = scmp.ne.s32.totalorder %s232, %s248
      %p250 = scmp.eq.s32.totalorder %s30, 0
      %p251 = por %p249, %p250
      %p252 = scmp.le.s32.totalorder 1, %s24
      %p253 = scmp.lt.s32.totalorder %s24, 3
      %p254 = pnand %p252, %p253
      %p255 = pneg %p254
      // Predicated region
      $region9: #{tpu_custom_call.1} parent=5 // pred_check
        _
      $region10: #{tpu_custom_call.1} parent=5 // pred_check_branch
        %257 = sbr.rel (%p254) target = $region12
      $region11: #{tpu_custom_call.1} parent=5 // pred_region
        %s258 = ssub.s32 %s24, 1
        // Predicated region
        $region13: #{tpu_custom_call.1} parent=11 // pred_check
          %p259 = pneg %p90
        $region14: #{tpu_custom_call.1} parent=11 // pred_check_branch
          %261 = sbr.rel (%p259) target = $region16
        $region15: #{tpu_custom_call.1} parent=11 // pred_region
          %s263 = ssub.s32 512, 512
          %264 = vsyncadd [#allocation7], %s263
          %s265 = smul.addr %s33, 8
          %s266 = smul.addr %s265, 64
          %s267 = scalar_lea.hbm %s1, %s266
          %s268 = sshll.u32 [#allocation6], 4
          %s269 = int_to_ptr.vmem [resolvable:$true] %s268
          %274 = dma.hbm_to_vmem [thread:$0]  %s267, 512, %s269, [#allocation7], 64, 64, 4
        $region16: #{tpu_custom_call.1} parent=11 // pred_fallthru
          _
        // Predicated region
        $region17: #{tpu_custom_call.1} parent=11 // pred_check
          %p275 = pneg %p111
        $region18: #{tpu_custom_call.1} parent=11 // pred_check_branch
          %277 = sbr.rel (%p275) target = $region20
        $region19: #{tpu_custom_call.1} parent=11 // pred_region
          %s279 = ssub.s32 1024, 1024
          %280 = vsyncadd [#allocation7], %s279
          %s281 = sshll.u32 [#allocation8], 4
          %s282 = int_to_ptr.vmem [resolvable:$true] %s281
          %287 = dma.hbm_to_vmem [thread:$0]  %s2, 1024, %s282, [#allocation7], 64, 64, 4
        $region20: #{tpu_custom_call.1} parent=11 // pred_fallthru
          _
        // Predicated region
        $region21: #{tpu_custom_call.1} parent=11 // pred_check
          %p288 = pneg %p132
        $region22: #{tpu_custom_call.1} parent=11 // pred_check_branch
          %290 = sbr.rel (%p288) target = $region24
        $region23: #{tpu_custom_call.1} parent=11 // pred_region
          %s292 = ssub.s32 16, 16
          %293 = vsyncadd [#allocation10], %s292
          %s295 = sshll.u32 [#allocation9], 4
          %s296 = int_to_ptr.vmem [resolvable:$true] %s295
          %298 = dma.hbm_to_vmem [thread:$0]  %s3, 16, %s296, [#allocation10]
        $region24: #{tpu_custom_call.1} parent=11 // pred_fallthru
          _
        // Predicated region
        $region25: #{tpu_custom_call.1} parent=11 // pred_check
          %p299 = pneg %p153
        $region26: #{tpu_custom_call.1} parent=11 // pred_check_branch
          %301 = sbr.rel (%p299) target = $region28
        $region27: #{tpu_custom_call.1} parent=11 // pred_region
          %s303 = ssub.s32 2048, 2048
          %304 = vsyncadd [#allocation10], %s303
          %s305 = sshll.u32 [#allocation11], 4
          %s306 = int_to_ptr.vmem [resolvable:$true] %s305
          %311 = dma.hbm_to_vmem [thread:$0]  %s4, 2048, %s306, [#allocation10], 128, 128, 8
        $region28: #{tpu_custom_call.1} parent=11 // pred_fallthru
          _
        // Predicated region
        $region29: #{tpu_custom_call.1} parent=11 // pred_check
          %p312 = pneg %p174
        $region30: #{tpu_custom_call.1} parent=11 // pred_check_branch
          %314 = sbr.rel (%p312) target = $region32
        $region31: #{tpu_custom_call.1} parent=11 // pred_region
          %s316 = ssub.s32 32, 32
          %317 = vsyncadd [#allocation13], %s316
          %s319 = sshll.u32 [#allocation12], 4
          %s320 = int_to_ptr.vmem [resolvable:$true] %s319
          %322 = dma.hbm_to_vmem [thread:$0]  %s5, 32, %s320, [#allocation13]
        $region32: #{tpu_custom_call.1} parent=11 // pred_fallthru
          _
        // Predicated region
        $region33: #{tpu_custom_call.1} parent=11 // pred_check
          %p323 = pneg %p195
        $region34: #{tpu_custom_call.1} parent=11 // pred_check_branch
          %325 = sbr.rel (%p323) target = $region36
        $region35: #{tpu_custom_call.1} parent=11 // pred_region
          %s327 = ssub.s32 1024, 1024
          %328 = vsyncadd [#allocation13], %s327
          %s329 = sshll.u32 [#allocation14], 4
          %s330 = int_to_ptr.vmem [resolvable:$true] %s329
          %335 = dma.hbm_to_vmem [thread:$0]  %s6, 1024, %s330, [#allocation13], 64, 64, 4
        $region36: #{tpu_custom_call.1} parent=11 // pred_fallthru
          _
        // Predicated region
        $region37: #{tpu_custom_call.1} parent=11 // pred_check
          %p336 = pneg %p216
        $region38: #{tpu_custom_call.1} parent=11 // pred_check_branch
          %338 = sbr.rel (%p336) target = $region40
        $region39: #{tpu_custom_call.1} parent=11 // pred_region
          %s340 = ssub.s32 16, 16
          %341 = vsyncadd [#allocation16], %s340
          %s343 = sshll.u32 [#allocation15], 4
          %s344 = int_to_ptr.vmem [resolvable:$true] %s343
          %346 = dma.hbm_to_vmem [thread:$0]  %s7, 16, %s344, [#allocation16]
        $region40: #{tpu_custom_call.1} parent=11 // pred_fallthru
          _
      $region12: #{tpu_custom_call.1} parent=5 // pred_fallthru
        _
      %p347 = scmp.lt.s32.totalorder %s24, 2
      // Predicated region
      $region41: #{tpu_custom_call.1} parent=5 // pred_check
        %p348 = pneg %p347
      $region42: #{tpu_custom_call.1} parent=5 // pred_check_branch
        %350 = sbr.rel (%p348) target = $region44
      $region43: #{tpu_custom_call.1} parent=5 // pred_region
        // Predicated region
        $region45: #{tpu_custom_call.1} parent=43 // pred_check
          %p351 = pneg %p58
        $region46: #{tpu_custom_call.1} parent=43 // pred_check_branch
          %353 = sbr.rel (%p351) target = $region48
        $region47: #{tpu_custom_call.1} parent=43 // pred_region
          %s354 = sand.u32 %s48, 1
          %s355 = scalar_lea.sflag [#allocation4], %s354
          %s356 = sand.u32 %s48, 1
          %s357 = smul.addr %s356, 64
          %s358 = scalar_lea.vmem [#allocation3], %s357
          %s359 = smul.u32 8, %s32
          %s361 = ssub.s32 1024, 1024
          %362 = vsyncadd %s355, %s361
          %s363 = smul.addr %s31, 8
          %s364 = sadd.s32 %s359, %s363
          %s365 = smul.addr %s364, 128
          %s366 = scalar_lea.hbm %s0, %s365
          %s367 = sshll.u32 %s358, 4
          %s368 = int_to_ptr.vmem [resolvable:$true] %s367
          %373 = dma.hbm_to_vmem [thread:$0]  %s366, 1024, %s368, %s355, 128, 128, 8
        $region48: #{tpu_custom_call.1} parent=43 // pred_fallthru
          _
      $region44: #{tpu_custom_call.1} parent=5 // pred_fallthru
        _
      %p374 = scmp.le.s32.totalorder 1, %s24
      %p375 = scmp.lt.s32.totalorder %s24, 3
      %p376 = pnand %p374, %p375
      %p377 = pneg %p376
      // Predicated region
      $region49: #{tpu_custom_call.1} parent=5 // pred_check
        _
      $region50: #{tpu_custom_call.1} parent=5 // pred_check_branch
        %379 = sbr.rel (%p376) target = $region52
      $region51: #{tpu_custom_call.1} parent=5 // pred_region
        %s380 = ssub.s32 %s24, 1
        %s381 = sand.u32 %s51, 1
        %s382 = scalar_lea.sflag [#allocation4], %s381
        %s383 = sand.u32 %s51, 1
        %s384 = smul.addr %s383, 64
        %s385 = scalar_lea.vmem [#allocation3], %s384
        // Predicated region
        $region53: #{tpu_custom_call.1} parent=51 // pred_check
          %p386 = pneg %p64
        $region54: #{tpu_custom_call.1} parent=51 // pred_check_branch
          %388 = sbr.rel (%p386) target = $region56
        $region55: #{tpu_custom_call.1} parent=51 // pred_region
          %389 = dma.done %s382, 1024
        $region56: #{tpu_custom_call.1} parent=51 // pred_fallthru
          _
        // Predicated region
        $region57: #{tpu_custom_call.1} parent=51 // pred_check
          %p390 = pneg %p90
        $region58: #{tpu_custom_call.1} parent=51 // pred_check_branch
          %392 = sbr.rel (%p390) target = $region60
        $region59: #{tpu_custom_call.1} parent=51 // pred_region
          %393 = dma.done [#allocation7], 512
        $region60: #{tpu_custom_call.1} parent=51 // pred_fallthru
          _
        // Predicated region
        $region61: #{tpu_custom_call.1} parent=51 // pred_check
          %p394 = pneg %p111
        $region62: #{tpu_custom_call.1} parent=51 // pred_check_branch
          %396 = sbr.rel (%p394) target = $region64
        $region63: #{tpu_custom_call.1} parent=51 // pred_region
          %397 = dma.done [#allocation7], 1024
        $region64: #{tpu_custom_call.1} parent=51 // pred_fallthru
          _
        // Predicated region
        $region65: #{tpu_custom_call.1} parent=51 // pred_check
          %p398 = pneg %p132
        $region66: #{tpu_custom_call.1} parent=51 // pred_check_branch
          %400 = sbr.rel (%p398) target = $region68
        $region67: #{tpu_custom_call.1} parent=51 // pred_region
          %401 = dma.done [#allocation10], 16
        $region68: #{tpu_custom_call.1} parent=51 // pred_fallthru
          _
        // Predicated region
        $region69: #{tpu_custom_call.1} parent=51 // pred_check
          %p402 = pneg %p153
        $region70: #{tpu_custom_call.1} parent=51 // pred_check_branch
          %404 = sbr.rel (%p402) target = $region72
        $region71: #{tpu_custom_call.1} parent=51 // pred_region
          %405 = dma.done [#allocation10], 2048
        $region72: #{tpu_custom_call.1} parent=51 // pred_fallthru
          _
        // Predicated region
        $region73: #{tpu_custom_call.1} parent=51 // pred_check
          %p406 = pneg %p174
        $region74: #{tpu_custom_call.1} parent=51 // pred_check_branch
          %408 = sbr.rel (%p406) target = $region76
        $region75: #{tpu_custom_call.1} parent=51 // pred_region
          %409 = dma.done [#allocation13], 32
        $region76: #{tpu_custom_call.1} parent=51 // pred_fallthru
          _
        // Predicated region
        $region77: #{tpu_custom_call.1} parent=51 // pred_check
          %p410 = pneg %p195
        $region78: #{tpu_custom_call.1} parent=51 // pred_check_branch
          %412 = sbr.rel (%p410) target = $region80
        $region79: #{tpu_custom_call.1} parent=51 // pred_region
          %413 = dma.done [#allocation13], 1024
        $region80: #{tpu_custom_call.1} parent=51 // pred_fallthru
          _
        // Predicated region
        $region81: #{tpu_custom_call.1} parent=51 // pred_check
          %p414 = pneg %p216
        $region82: #{tpu_custom_call.1} parent=51 // pred_check_branch
          %416 = sbr.rel (%p414) target = $region84
        $region83: #{tpu_custom_call.1} parent=51 // pred_region
          %417 = dma.done [#allocation16], 16
        $region84: #{tpu_custom_call.1} parent=51 // pred_fallthru
          _
        %s418 = sand.u32 %s51, 1
        %s419 = scalar_lea.sflag [#allocation4], %s418
        %s420 = sand.u32 %s51, 1
        %s421 = smul.addr %s420, 64
        %s422 = scalar_lea.vmem [#allocation3], %s421
        %p423 = pneg %p64
        %p424 = pneg %p61
        %p425 = pneg %p90
        %p426 = pneg %p87
        %p427 = pneg %p111
        %p428 = pneg %p108
        %p429 = pneg %p132
        %p430 = pneg %p129
        %p431 = pneg %p153
        %p432 = pneg %p150
        %p433 = pneg %p174
        %p434 = pneg %p171
        %p435 = pneg %p195
        %p436 = pneg %p192
        %p437 = pneg %p216
        %p438 = pneg %p213
        %p439 = pneg %p244
        %p440 = pneg %p241
        %s441 = sand.u32 %s231, 1
        %s442 = scalar_lea.sflag [#allocation5], %s441
        %s443 = sand.u32 %s231, 1
        %s444 = smul.addr %s443, 64
        %s445 = scalar_lea.vmem [#allocation17], %s444
        %s446 = smul.u32 8, %s34
        %s447 = smul.u32 8, %s34
        %p449 = scmp.eq.s32.totalorder %s34, 0
        // Predicated region
        $region85: #{tpu_custom_call.1} parent=51 // pred_check
          %p450 = pneg %p449
        $region86: #{tpu_custom_call.1} parent=51 // pred_check_branch
          %452 = sbr.rel (%p450) target = $region88
        $region87: #{tpu_custom_call.1} parent=51 // pred_region
          %v453 = vld [vmem:[#allocation6] sm:$0xf]
          %v454 = vld [vmem:[#allocation6 + $0x4] sm:$0xf]
          %v455 = vld [vmem:[#allocation6 + $0x8] sm:$0xf]
          %v456 = vld [vmem:[#allocation6 + $0xc] sm:$0xf]
          %v457 = vld [vmem:[#allocation6 + $0x10] sm:$0xf]
          %v458 = vld [vmem:[#allocation6 + $0x14] sm:$0xf]
          %v459 = vld [vmem:[#allocation6 + $0x18] sm:$0xf]
          %v460 = vld [vmem:[#allocation6 + $0x1c] sm:$0xf]
          %v461 = vld [vmem:[#allocation11] sm:$0xff]
          %v462 = vld [vmem:[#allocation11 + $0x8] sm:$0xff]
          %v463 = vld [vmem:[#allocation11 + $0x10] sm:$0xff]
          %v464 = vld [vmem:[#allocation11 + $0x18] sm:$0xff]
          %v465 = vld [vmem:[#allocation11 + $0x20] sm:$0xff]
          %v466 = vld [vmem:[#allocation11 + $0x28] sm:$0xff]
          %v467 = vld [vmem:[#allocation11 + $0x30] sm:$0xff]
          %v468 = vld [vmem:[#allocation11 + $0x38] sm:$0xff]
          %v469 = vld [vmem:[#allocation11 + $0x40] sm:$0xff]
          %v470 = vld [vmem:[#allocation11 + $0x48] sm:$0xff]
          %v471 = vld [vmem:[#allocation11 + $0x50] sm:$0xff]
          %v472 = vld [vmem:[#allocation11 + $0x58] sm:$0xff]
          %v473 = vld [vmem:[#allocation11 + $0x60] sm:$0xff]
          %v474 = vld [vmem:[#allocation11 + $0x68] sm:$0xff]
          %v475 = vld [vmem:[#allocation11 + $0x70] sm:$0xff]
          %v476 = vld [vmem:[#allocation11 + $0x78] sm:$0xff]
          %v477 = vld [vmem:[#allocation12] sm:$0x3]
          %v479 = vlaneseq
          %v480 = vshrl.u32 %v479, 7
          %v481 = vsub.s32 0, %v480
          %v482 = vrot.slane %v477, %v481
          %v483 = vlaneseq
          %v484 = vshrl.u32 %v483, 7
          %v485 = vsub.s32 1, %v484
          %v486 = vrot.slane %v477, %v485
          %v497 = vunpack.c.l.b16 %v453
          %v498 = vunpack.c.l.b16 %v454
          %v499 = vunpack.c.l.b16 %v455
          %v500 = vunpack.c.l.b16 %v456
          %v501 = vunpack.c.l.b16 %v457
          %v502 = vunpack.c.l.b16 %v458
          %v503 = vunpack.c.l.b16 %v459
          %v504 = vunpack.c.l.b16 %v460
          %v505 = vpack.c.b16 %v498, %v497
          %v506 = vpack.c.b16 %v500, %v499
          %v507 = vpack.c.b16 %v502, %v501
          %v508 = vpack.c.b16 %v504, %v503
          %v529 = vunpack.c.l.b16 %v461
          %v530 = vunpack.c.h.b16 %v461
          %v531 = vunpack.c.l.b16 %v462
          %v532 = vunpack.c.h.b16 %v462
          %v533 = vunpack.c.l.b16 %v463
          %v534 = vunpack.c.h.b16 %v463
          %v535 = vunpack.c.l.b16 %v464
          %v536 = vunpack.c.h.b16 %v464
          %v537 = vunpack.c.l.b16 %v465
          %v538 = vunpack.c.h.b16 %v465
          %v539 = vunpack.c.l.b16 %v466
          %v540 = vunpack.c.h.b16 %v466
          %v541 = vunpack.c.l.b16 %v467
          %v542 = vunpack.c.h.b16 %v467
          %v543 = vunpack.c.l.b16 %v468
          %v544 = vunpack.c.h.b16 %v468
          %v545 = vunpack.c.l.b16 %v469
          %v546 = vunpack.c.h.b16 %v469
          %v547 = vunpack.c.l.b16 %v470
          %v548 = vunpack.c.h.b16 %v470
          %v549 = vunpack.c.l.b16 %v471
          %v550 = vunpack.c.h.b16 %v471
          %v551 = vunpack.c.l.b16 %v472
          %v552 = vunpack.c.h.b16 %v472
          %v553 = vunpack.c.l.b16 %v473
          %v554 = vunpack.c.h.b16 %v473
          %v555 = vunpack.c.l.b16 %v474
          %v556 = vunpack.c.h.b16 %v474
          %v557 = vunpack.c.l.b16 %v475
          %v558 = vunpack.c.h.b16 %v475
          %v559 = vunpack.c.l.b16 %v476
          %v560 = vunpack.c.h.b16 %v476
          %v561 = vpack.c.b16 %v531, %v529
          %v562 = vpack.c.b16 %v532, %v530
          %v563 = vpack.c.b16 %v535, %v533
          %v564 = vpack.c.b16 %v536, %v534
          %v565 = vpack.c.b16 %v539, %v537
          %v566 = vpack.c.b16 %v540, %v538
          %v567 = vpack.c.b16 %v543, %v541
          %v568 = vpack.c.b16 %v544, %v542
          %v569 = vpack.c.b16 %v547, %v545
          %v570 = vpack.c.b16 %v548, %v546
          %v571 = vpack.c.b16 %v551, %v549
          %v572 = vpack.c.b16 %v552, %v550
          %v573 = vpack.c.b16 %v555, %v553
          %v574 = vpack.c.b16 %v556, %v554
          %v575 = vpack.c.b16 %v559, %v557
          %v576 = vpack.c.b16 %v560, %v558
          %593 = vmatprep.subr.bf16.mxu0 %v562
          %594 = vmatpush1.bf16.msra.mxu0 %v561
          %595 = vmatprep.subr.bf16.mxu0 %v564
          %596 = vmatpush1.bf16.msra.mxu0 %v563
          %597 = vmatprep.subr.bf16.mxu0 %v566
          %598 = vmatpush1.bf16.msra.mxu0 %v565
          %599 = vmatprep.subr.bf16.mxu0 %v568
          %600 = vmatpush1.bf16.msra.mxu0 %v567
          %601 = vmatprep.subr.bf16.mxu0 %v570
          %602 = vmatpush1.bf16.msra.mxu0 %v569
          %603 = vmatprep.subr.bf16.mxu0 %v572
          %604 = vmatpush1.bf16.msra.mxu0 %v571
          %605 = vmatprep.subr.bf16.mxu0 %v574
          %606 = vmatpush1.bf16.msra.mxu0 %v573
          %607 = vmatprep.subr.bf16.mxu0 %v576
          %608 = vmatpush1.bf16.msra.mxu0 %v575
          %609 = vmatprep.subr.bf16.mxu0 0
          %610 = vmatpush1.bf16.msra.mxu0 0
          %611 = vmatprep.subr.bf16.mxu0 0
          %612 = vmatpush1.bf16.msra.mxu0 0
          %613 = vmatprep.subr.bf16.mxu0 0
          %614 = vmatpush1.bf16.msra.mxu0 0
          %615 = vmatprep.subr.bf16.mxu0 0
          %616 = vmatpush1.bf16.msra.mxu0 0
          %617 = vmatprep.subr.bf16.mxu0 0
          %618 = vmatpush1.bf16.msra.mxu0 0
          %619 = vmatprep.subr.bf16.mxu0 0
          %620 = vmatpush1.bf16.msra.mxu0 0
          %621 = vmatprep.subr.bf16.mxu0 0
          %622 = vmatpush1.bf16.msra.mxu0 0
          %623 = vmatprep.subr.bf16.mxu0 0
          %624 = vmatpush1.bf16.msra.mxu0 0
          %625 = vmatprep.mubr.bf16.mxu0 0
          %626 = vmatmul.mubr.bf16.gmra.mrb[0].mxu0 %v505
          %v627 = vpop.f32.mrb[0].mxu0
          %v628 = vadd.f32 %v482, %v627
          %v629 = vpop.f32.mrb[0].mxu0
          %v630 = vadd.f32 %v486, %v629
          %v631 = vpop.f32.mrb[0].mxu0
          %v632 = vadd.f32 %v482, %v631
          %v633 = vpop.f32.mrb[0].mxu0
          %v634 = vadd.f32 %v486, %v633
          %635 = vmatprep.mubr.bf16.mxu0 0
          %636 = vmatmul.mubr.bf16.gmra.mrb[0].mxu0 %v506
          %v637 = vpop.f32.mrb[0].mxu0
          %v638 = vadd.f32 %v482, %v637
          %v639 = vpop.f32.mrb[0].mxu0
          %v640 = vadd.f32 %v486, %v639
          %v641 = vpop.f32.mrb[0].mxu0
          %v642 = vadd.f32 %v482, %v641
          %v643 = vpop.f32.mrb[0].mxu0
          %v644 = vadd.f32 %v486, %v643
          %645 = vmatprep.mubr.bf16.mxu0 0
          %646 = vmatmul.mubr.bf16.gmra.mrb[0].mxu0 %v507
          %v647 = vpop.f32.mrb[0].mxu0
          %v648 = vadd.f32 %v482, %v647
          %v649 = vpop.f32.mrb[0].mxu0
          %v650 = vadd.f32 %v486, %v649
          %v651 = vpop.f32.mrb[0].mxu0
          %v652 = vadd.f32 %v482, %v651
          %v653 = vpop.f32.mrb[0].mxu0
          %v654 = vadd.f32 %v486, %v653
          %655 = vmatprep.mubr.bf16.mxu0 0
          %656 = vmatmul.mubr.bf16.gmra.mrb[0].mxu0 %v508
          %v657 = vpop.f32.mrb[0].mxu0
          %v658 = vadd.f32 %v482, %v657
          %v659 = vpop.f32.mrb[0].mxu0
          %v660 = vadd.f32 %v486, %v659
          %v661 = vpop.f32.mrb[0].mxu0
          %v662 = vadd.f32 %v482, %v661
          %v663 = vpop.f32.mrb[0].mxu0
          %v664 = vadd.f32 %v486, %v663
          %665 = vdwg.mxu0
          %v666 = vpack.c.bf16 %v632, %v628
          %v667 = vpack.c.bf16 %v634, %v630
          %v668 = vpack.c.bf16 %v642, %v638
          %v669 = vpack.c.bf16 %v644, %v640
          %v670 = vpack.c.bf16 %v652, %v648
          %v671 = vpack.c.bf16 %v654, %v650
          %v672 = vpack.c.bf16 %v662, %v658
          %v673 = vpack.c.bf16 %v664, %v660
          %674 = vst [vmem:[#allocation2] sm:$0xff] %v666
          %675 = vst [vmem:[#allocation2 + $0x8] sm:$0xff] %v667
          %676 = vst [vmem:[#allocation2 + $0x10] sm:$0xff] %v668
          %677 = vst [vmem:[#allocation2 + $0x18] sm:$0xff] %v669
          %678 = vst [vmem:[#allocation2 + $0x20] sm:$0xff] %v670
          %679 = vst [vmem:[#allocation2 + $0x28] sm:$0xff] %v671
          %680 = vst [vmem:[#allocation2 + $0x30] sm:$0xff] %v672
          %681 = vst [vmem:[#allocation2 + $0x38] sm:$0xff] %v673
        $region88: #{tpu_custom_call.1} parent=51 // pred_fallthru
          _
        %v682 = vld [vmem:[%s385] sm:$0xff]
        %v683 = vld [vmem:[%s385 + $0x8] sm:$0xff]
        %v684 = vld [vmem:[%s385 + $0x10] sm:$0xff]
        %v685 = vld [vmem:[%s385 + $0x18] sm:$0xff]
        %v686 = vld [vmem:[%s385 + $0x20] sm:$0xff]
        %v687 = vld [vmem:[%s385 + $0x28] sm:$0xff]
        %v688 = vld [vmem:[%s385 + $0x30] sm:$0xff]
        %v689 = vld [vmem:[%s385 + $0x38] sm:$0xff]
        %v690 = vpack.c.bf16 %v683, %v682
        %v691 = vpack.c.bf16 %v685, %v684
        %v692 = vpack.c.bf16 %v687, %v686
        %v693 = vpack.c.bf16 %v689, %v688
        %v694 = vld [vmem:[#allocation8] sm:$0xf]
        %v695 = vld [vmem:[#allocation8 + $0x4] sm:$0xf]
        %v696 = vld [vmem:[#allocation8 + $0x8] sm:$0xf]
        %v697 = vld [vmem:[#allocation8 + $0xc] sm:$0xf]
        %v698 = vld [vmem:[#allocation8 + $0x10] sm:$0xf]
        %v699 = vld [vmem:[#allocation8 + $0x14] sm:$0xf]
        %v700 = vld [vmem:[#allocation8 + $0x18] sm:$0xf]
        %v701 = vld [vmem:[#allocation8 + $0x1c] sm:$0xf]
        %v702 = vld [vmem:[#allocation8 + $0x20] sm:$0xf]
        %v703 = vld [vmem:[#allocation8 + $0x24] sm:$0xf]
        %v704 = vld [vmem:[#allocation8 + $0x28] sm:$0xf]
        %v705 = vld [vmem:[#allocation8 + $0x2c] sm:$0xf]
        %v706 = vld [vmem:[#allocation8 + $0x30] sm:$0xf]
        %v707 = vld [vmem:[#allocation8 + $0x34] sm:$0xf]
        %v708 = vld [vmem:[#allocation8 + $0x38] sm:$0xf]
        %v709 = vld [vmem:[#allocation8 + $0x3c] sm:$0xf]
        %v710 = vld [vmem:[#allocation9] sm:$0x1]
        %v712 = vlaneseq
        %v713 = vshrl.u32 %v712, 7
        %v714 = vsub.s32 0, %v713
        %v715 = vrot.slane %v710, %v714
        %v733 = vunpack.c.l.b16 %v694
        %v734 = vunpack.c.l.b16 %v695
        %v735 = vunpack.c.l.b16 %v696
        %v736 = vunpack.c.l.b16 %v697
        %v737 = vunpack.c.l.b16 %v698
        %v738 = vunpack.c.l.b16 %v699
        %v739 = vunpack.c.l.b16 %v700
        %v740 = vunpack.c.l.b16 %v701
        %v741 = vunpack.c.l.b16 %v702
        %v742 = vunpack.c.l.b16 %v703
        %v743 = vunpack.c.l.b16 %v704
        %v744 = vunpack.c.l.b16 %v705
        %v745 = vunpack.c.l.b16 %v706
        %v746 = vunpack.c.l.b16 %v707
        %v747 = vunpack.c.l.b16 %v708
        %v748 = vunpack.c.l.b16 %v709
        %v749 = vpack.c.b16 %v734, %v733
        %v750 = vpack.c.b16 %v736, %v735
        %v751 = vpack.c.b16 %v738, %v737
        %v752 = vpack.c.b16 %v740, %v739
        %v753 = vpack.c.b16 %v742, %v741
        %v754 = vpack.c.b16 %v744, %v743
        %v755 = vpack.c.b16 %v746, %v745
        %v756 = vpack.c.b16 %v748, %v747
        %765 = vmatprep.subr.bf16.mxu0 0
        %766 = vmatpush1.bf16.msra.mxu0 %v749
        %767 = vmatprep.subr.bf16.mxu0 0
        %768 = vmatpush1.bf16.msra.mxu0 %v750
        %769 = vmatprep.subr.bf16.mxu0 0
        %770 = vmatpush1.bf16.msra.mxu0 %v751
        %771 = vmatprep.subr.bf16.mxu0 0
        %772 = vmatpush1.bf16.msra.mxu0 %v752
        %773 = vmatprep.subr.bf16.mxu0 0
        %774 = vmatpush1.bf16.msra.mxu0 %v753
        %775 = vmatprep.subr.bf16.mxu0 0
        %776 = vmatpush1.bf16.msra.mxu0 %v754
        %777 = vmatprep.subr.bf16.mxu0 0
        %778 = vmatpush1.bf16.msra.mxu0 %v755
        %779 = vmatprep.subr.bf16.mxu0 0
        %780 = vmatpush1.bf16.msra.mxu0 %v756
        %781 = vmatprep.subr.bf16.mxu0 0
        %782 = vmatpush1.bf16.msra.mxu0 0
        %783 = vmatprep.subr.bf16.mxu0 0
        %784 = vmatpush1.bf16.msra.mxu0 0
        %785 = vmatprep.subr.bf16.mxu0 0
        %786 = vmatpush1.bf16.msra.mxu0 0
        %787 = vmatprep.subr.bf16.mxu0 0
        %788 = vmatpush1.bf16.msra.mxu0 0
        %789 = vmatprep.subr.bf16.mxu0 0
        %790 = vmatpush1.bf16.msra.mxu0 0
        %791 = vmatprep.subr.bf16.mxu0 0
        %792 = vmatpush1.bf16.msra.mxu0 0
        %793 = vmatprep.subr.bf16.mxu0 0
        %794 = vmatpush1.bf16.msra.mxu0 0
        %795 = vmatprep.subr.bf16.mxu0 0
        %796 = vmatpush1.bf16.msra.mxu0 0
        %797 = vmatprep.mubr.bf16.mxu0 0
        %798 = vmatmul.mubr.bf16.gmra.mrb[0].mxu0 %v690
        %v799 = vpop.f32.mrb[0].mxu0
        %v800 = vadd.f32 %v715, %v799
        %v801 = vpop.f32.mrb[0].mxu0
        %v802 = vpop.f32.mrb[0].mxu0
        %v803 = vadd.f32 %v715, %v802
        %v804 = vpop.f32.mrb[0].mxu0
        %805 = vmatprep.mubr.bf16.mxu0 0
        %806 = vmatmul.mubr.bf16.gmra.mrb[0].mxu0 %v691
        %v807 = vpop.f32.mrb[0].mxu0
        %v808 = vadd.f32 %v715, %v807
        %v809 = vpop.f32.mrb[0].mxu0
        %v810 = vpop.f32.mrb[0].mxu0
        %v811 = vadd.f32 %v715, %v810
        %v812 = vpop.f32.mrb[0].mxu0
        %813 = vmatprep.mubr.bf16.mxu0 0
        %814 = vmatmul.mubr.bf16.gmra.mrb[0].mxu0 %v692
        %v815 = vpop.f32.mrb[0].mxu0
        %v816 = vadd.f32 %v715, %v815
        %v817 = vpop.f32.mrb[0].mxu0
        %v818 = vpop.f32.mrb[0].mxu0
        %v819 = vadd.f32 %v715, %v818
        %v820 = vpop.f32.mrb[0].mxu0
        %821 = vmatprep.mubr.bf16.mxu0 0
        %822 = vmatmul.mubr.bf16.gmra.mrb[0].mxu0 %v693
        %v823 = vpop.f32.mrb[0].mxu0
        %v824 = vadd.f32 %v715, %v823
        %v825 = vpop.f32.mrb[0].mxu0
        %v826 = vpop.f32.mrb[0].mxu0
        %v827 = vadd.f32 %v715, %v826
        %v828 = vpop.f32.mrb[0].mxu0
        %829 = vdwg.mxu0
        %v830 = vpack.c.bf16 %v803, %v800
        %v831 = vpack.c.bf16 %v811, %v808
        %v832 = vpack.c.bf16 %v819, %v816
        %v833 = vpack.c.bf16 %v827, %v824
        %v834 = vld [vmem:[#allocation2] sm:$0xff]
        %v835 = vld [vmem:[#allocation2 + $0x8] sm:$0xff]
        %v836 = vld [vmem:[#allocation2 + $0x10] sm:$0xff]
        %v837 = vld [vmem:[#allocation2 + $0x18] sm:$0xff]
        %v838 = vld [vmem:[#allocation2 + $0x20] sm:$0xff]
        %v839 = vld [vmem:[#allocation2 + $0x28] sm:$0xff]
        %v840 = vld [vmem:[#allocation2 + $0x30] sm:$0xff]
        %v841 = vld [vmem:[#allocation2 + $0x38] sm:$0xff]
        %842 = vmatprep.subr.bf16.mxu0 0
        %843 = vmatpush1.bf16.xpose.msra.mxu0 %v834
        %844 = vmatprep.subr.bf16.mxu0 0
        %845 = vmatpush1.bf16.xpose.msra.mxu0 %v836
        %846 = vmatprep.subr.bf16.mxu0 0
        %847 = vmatpush1.bf16.xpose.msra.mxu0 %v838
        %848 = vmatprep.subr.bf16.mxu0 0
        %849 = vmatpush1.bf16.xpose.msra.mxu0 %v840
        %850 = vmatprep.subr.bf16.mxu0 0
        %851 = vmatpush1.bf16.xpose.msra.mxu0 0
        %852 = vmatprep.subr.bf16.mxu0 0
        %853 = vmatpush1.bf16.xpose.msra.mxu0 0
        %854 = vmatprep.subr.bf16.mxu0 0
        %855 = vmatpush1.bf16.xpose.msra.mxu0 0
        %856 = vmatprep.subr.bf16.mxu0 0
        %857 = vmatpush1.bf16.xpose.msra.mxu0 0
        %858 = vmatprep.subr.bf16.mxu0 0
        %859 = vmatpush1.bf16.xpose.msra.mxu0 0
        %860 = vmatprep.subr.bf16.mxu0 0
        %861 = vmatpush1.bf16.xpose.msra.mxu0 0
        %862 = vmatprep.subr.bf16.mxu0 0
        %863 = vmatpush1.bf16.xpose.msra.mxu0 0
        %864 = vmatprep.subr.bf16.mxu0 0
        %865 = vmatpush1.bf16.xpose.msra.mxu0 0
        %866 = vmatprep.subr.bf16.mxu0 0
        %867 = vmatpush1.bf16.xpose.msra.mxu0 0
        %868 = vmatprep.subr.bf16.mxu0 0
        %869 = vmatpush1.bf16.xpose.msra.mxu0 0
        %870 = vmatprep.subr.bf16.mxu0 0
        %871 = vmatpush1.bf16.xpose.msra.mxu0 0
        %872 = vmatprep.subr.bf16.mxu0 0
        %873 = vmatpush1.bf16.xpose.msra.mxu0 0
        %874 = vmatprep.mubr.bf16.mxu0 0
        %875 = vmatmul.mubr.bf16.gmra.mrb[0].mxu0 %v830
        %v876 = vpop.f32.mrb[0].mxu0
        %v877 = vadd.f32 0.0, %v876
        %v878 = vpop.f32.mrb[0].mxu0
        %v879 = vpop.f32.mrb[0].mxu0
        %v880 = vadd.f32 0.0, %v879
        %v881 = vpop.f32.mrb[0].mxu0
        %882 = vmatprep.mubr.bf16.mxu0 0
        %883 = vmatmul.mubr.bf16.gmra.mrb[0].mxu0 %v831
        %v884 = vpop.f32.mrb[0].mxu0
        %v885 = vadd.f32 0.0, %v884
        %v886 = vpop.f32.mrb[0].mxu0
        %v887 = vpop.f32.mrb[0].mxu0
        %v888 = vadd.f32 0.0, %v887
        %v889 = vpop.f32.mrb[0].mxu0
        %890 = vmatprep.mubr.bf16.mxu0 0
        %891 = vmatmul.mubr.bf16.gmra.mrb[0].mxu0 %v832
        %v892 = vpop.f32.mrb[0].mxu0
        %v893 = vadd.f32 0.0, %v892
        %v894 = vpop.f32.mrb[0].mxu0
        %v895 = vpop.f32.mrb[0].mxu0
        %v896 = vadd.f32 0.0, %v895
        %v897 = vpop.f32.mrb[0].mxu0
        %898 = vmatprep.mubr.bf16.mxu0 0
        %899 = vmatmul.mubr.bf16.gmra.mrb[0].mxu0 %v833
        %v900 = vpop.f32.mrb[0].mxu0
        %v901 = vadd.f32 0.0, %v900
        %v902 = vpop.f32.mrb[0].mxu0
        %v903 = vpop.f32.mrb[0].mxu0
        %v904 = vadd.f32 0.0, %v903
        %v905 = vpop.f32.mrb[0].mxu0
        %906 = vdwg.mxu0
        %vm907 = vcmask 523264
        %v908 = vsel %vm907, %v877, -inf
        %909 = vmax.xlane.f32.xlu0 %v908
        %v910 = vpop.xlane.xlu0 %909
        %v911 = vsel %vm907, %v880, -inf
        %912 = vmax.xlane.f32.xlu0 %v911
        %v913 = vpop.xlane.xlu0 %912
        %v914 = vsel %vm907, %v885, -inf
        %915 = vmax.xlane.f32.xlu0 %v914
        %v916 = vpop.xlane.xlu0 %915
        %v917 = vsel %vm907, %v888, -inf
        %918 = vmax.xlane.f32.xlu0 %v917
        %v919 = vpop.xlane.xlu0 %918
        %v920 = vsel %vm907, %v893, -inf
        %921 = vmax.xlane.f32.xlu0 %v920
        %v922 = vpop.xlane.xlu0 %921
        %v923 = vsel %vm907, %v896, -inf
        %924 = vmax.xlane.f32.xlu0 %v923
        %v925 = vpop.xlane.xlu0 %924
        %v926 = vsel %vm907, %v901, -inf
        %927 = vmax.xlane.f32.xlu0 %v926
        %v928 = vpop.xlane.xlu0 %927
        %v929 = vsel %vm907, %v904, -inf
        %930 = vmax.xlane.f32.xlu0 %v929
        %v931 = vpop.xlane.xlu0 %930
        %v932 = vsub.f32 %v877, %v910
        %v933 = vsub.f32 %v880, %v913
        %v934 = vsub.f32 %v885, %v916
        %v935 = vsub.f32 %v888, %v919
        %v936 = vsub.f32 %v893, %v922
        %v937 = vsub.f32 %v896, %v925
        %v938 = vsub.f32 %v901, %v928
        %v939 = vsub.f32 %v904, %v931
        %v940 = vmul.f32 %v932, 1.442695
        %v941 = vpow.pop %v940
        %v942 = vmul.f32 %v933, 1.442695
        %v943 = vpow.pop %v942
        %v944 = vmul.f32 %v934, 1.442695
        %v945 = vpow.pop %v944
        %v946 = vmul.f32 %v935, 1.442695
        %v947 = vpow.pop %v946
        %v948 = vmul.f32 %v936, 1.442695
        %v949 = vpow.pop %v948
        %v950 = vmul.f32 %v937, 1.442695
        %v951 = vpow.pop %v950
        %v952 = vmul.f32 %v938, 1.442695
        %v953 = vpow.pop %v952
        %v954 = vmul.f32 %v939, 1.442695
        %v955 = vpow.pop %v954
        %v956 = vsel %vm907, %v941, 0.0
        %957 = vadd.xlane.f32.xlu0 %v956
        %v958 = vpop.xlane.xlu0 %957
        %v959 = vsel %vm907, %v943, 0.0
        %960 = vadd.xlane.f32.xlu0 %v959
        %v961 = vpop.xlane.xlu0 %960
        %v962 = vsel %vm907, %v945, 0.0
        %963 = vadd.xlane.f32.xlu0 %v962
        %v964 = vpop.xlane.xlu0 %963
        %v965 = vsel %vm907, %v947, 0.0
        %966 = vadd.xlane.f32.xlu0 %v965
        %v967 = vpop.xlane.xlu0 %966
        %v968 = vsel %vm907, %v949, 0.0
        %969 = vadd.xlane.f32.xlu0 %v968
        %v970 = vpop.xlane.xlu0 %969
        %v971 = vsel %vm907, %v951, 0.0
        %972 = vadd.xlane.f32.xlu0 %v971
        %v973 = vpop.xlane.xlu0 %972
        %v974 = vsel %vm907, %v953, 0.0
        %975 = vadd.xlane.f32.xlu0 %v974
        %v976 = vpop.xlane.xlu0 %975
        %v977 = vsel %vm907, %v955, 0.0
        %978 = vadd.xlane.f32.xlu0 %v977
        %v979 = vpop.xlane.xlu0 %978
        %v980 = vpack.c.bf16 %v943, %v941
        %v981 = vpack.c.bf16 %v947, %v945
        %v982 = vpack.c.bf16 %v951, %v949
        %v983 = vpack.c.bf16 %v955, %v953
        %v985 = vsel %vm907, %v980, 0
        %v988 = vsel %vm907, %v981, 0
        %v991 = vsel %vm907, %v982, 0
        %v994 = vsel %vm907, %v983, 0
        %996 = vmatprep.subr.bf16.mxu0 0
        %997 = vmatpush1.bf16.msra.mxu0 %v835
        %998 = vmatprep.subr.bf16.mxu0 0
        %999 = vmatpush1.bf16.msra.mxu0 %v837
        %1000 = vmatprep.subr.bf16.mxu0 0
        %1001 = vmatpush1.bf16.msra.mxu0 %v839
        %1002 = vmatprep.subr.bf16.mxu0 0
        %1003 = vmatpush1.bf16.msra.mxu0 %v841
        %1004 = vmatprep.subr.bf16.mxu0 0
        %1005 = vmatpush1.bf16.msra.mxu0 0
        %1006 = vmatprep.subr.bf16.mxu0 0
        %1007 = vmatpush1.bf16.msra.mxu0 0
        %1008 = vmatprep.subr.bf16.mxu0 0
        %1009 = vmatpush1.bf16.msra.mxu0 0
        %1010 = vmatprep.subr.bf16.mxu0 0
        %1011 = vmatpush1.bf16.msra.mxu0 0
        %1012 = vmatprep.subr.bf16.mxu0 0
        %1013 = vmatpush1.bf16.msra.mxu0 0
        %1014 = vmatprep.subr.bf16.mxu0 0
        %1015 = vmatpush1.bf16.msra.mxu0 0
        %1016 = vmatprep.subr.bf16.mxu0 0
        %1017 = vmatpush1.bf16.msra.mxu0 0
        %1018 = vmatprep.subr.bf16.mxu0 0
        %1019 = vmatpush1.bf16.msra.mxu0 0
        %1020 = vmatprep.subr.bf16.mxu0 0
        %1021 = vmatpush1.bf16.msra.mxu0 0
        %1022 = vmatprep.subr.bf16.mxu0 0
        %1023 = vmatpush1.bf16.msra.mxu0 0
        %1024 = vmatprep.subr.bf16.mxu0 0
        %1025 = vmatpush1.bf16.msra.mxu0 0
        %1026 = vmatprep.subr.bf16.mxu0 0
        %1027 = vmatpush1.bf16.msra.mxu0 0
        %1028 = vmatprep.mubr.bf16.mxu0 0
        %1029 = vmatmul.mubr.bf16.gmra.mrb[0].mxu0 %v985
        %v1030 = vpop.f32.mrb[0].mxu0
        %v1031 = vadd.f32 0.0, %v1030
        %v1032 = vpop.f32.mrb[0].mxu0
        %v1033 = vpop.f32.mrb[0].mxu0
        %v1034 = vadd.f32 0.0, %v1033
        %v1035 = vpop.f32.mrb[0].mxu0
        %1036 = vmatprep.mubr.bf16.mxu0 0
        %1037 = vmatmul.mubr.bf16.gmra.mrb[0].mxu0 %v988
        %v1038 = vpop.f32.mrb[0].mxu0
        %v1039 = vadd.f32 0.0, %v1038
        %v1040 = vpop.f32.mrb[0].mxu0
        %v1041 = vpop.f32.mrb[0].mxu0
        %v1042 = vadd.f32 0.0, %v1041
        %v1043 = vpop.f32.mrb[0].mxu0
        %1044 = vmatprep.mubr.bf16.mxu0 0
        %1045 = vmatmul.mubr.bf16.gmra.mrb[0].mxu0 %v991
        %v1046 = vpop.f32.mrb[0].mxu0
        %v1047 = vadd.f32 0.0, %v1046
        %v1048 = vpop.f32.mrb[0].mxu0
        %v1049 = vpop.f32.mrb[0].mxu0
        %v1050 = vadd.f32 0.0, %v1049
        %v1051 = vpop.f32.mrb[0].mxu0
        %1052 = vmatprep.mubr.bf16.mxu0 0
        %1053 = vmatmul.mubr.bf16.gmra.mrb[0].mxu0 %v994
        %v1054 = vpop.f32.mrb[0].mxu0
        %v1055 = vadd.f32 0.0, %v1054
        %v1056 = vpop.f32.mrb[0].mxu0
        %v1057 = vpop.f32.mrb[0].mxu0
        %v1058 = vadd.f32 0.0, %v1057
        %v1059 = vpop.f32.mrb[0].mxu0
        %1060 = vdwg.mxu0
        %v1061 = vrcp.pop %v958
        %v1062 = vrcp.pop %v961
        %v1063 = vrcp.pop %v964
        %v1064 = vrcp.pop %v967
        %v1065 = vrcp.pop %v970
        %v1066 = vrcp.pop %v973
        %v1067 = vrcp.pop %v976
        %v1068 = vrcp.pop %v979
        %v1069 = vmul.f32 %v1031, %v1061
        %v1070 = vmul.f32 %v1034, %v1062
        %v1071 = vmul.f32 %v1039, %v1063
        %v1072 = vmul.f32 %v1042, %v1064
        %v1073 = vmul.f32 %v1047, %v1065
        %v1074 = vmul.f32 %v1050, %v1066
        %v1075 = vmul.f32 %v1055, %v1067
        %v1076 = vmul.f32 %v1058, %v1068
        %v1077 = vpack.c.bf16 %v1070, %v1069
        %v1078 = vpack.c.bf16 %v1072, %v1071
        %v1079 = vpack.c.bf16 %v1074, %v1073
        %v1080 = vpack.c.bf16 %v1076, %v1075
        %v1081 = vld [vmem:[#allocation14] sm:$0xf]
        %v1082 = vld [vmem:[#allocation14 + $0x4] sm:$0xf]
        %v1083 = vld [vmem:[#allocation14 + $0x8] sm:$0xf]
        %v1084 = vld [vmem:[#allocation14 + $0xc] sm:$0xf]
        %v1085 = vld [vmem:[#allocation14 + $0x10] sm:$0xf]
        %v1086 = vld [vmem:[#allocation14 + $0x14] sm:$0xf]
        %v1087 = vld [vmem:[#allocation14 + $0x18] sm:$0xf]
        %v1088 = vld [vmem:[#allocation14 + $0x1c] sm:$0xf]
        %v1089 = vld [vmem:[#allocation14 + $0x20] sm:$0xf]
        %v1090 = vld [vmem:[#allocation14 + $0x24] sm:$0xf]
        %v1091 = vld [vmem:[#allocation14 + $0x28] sm:$0xf]
        %v1092 = vld [vmem:[#allocation14 + $0x2c] sm:$0xf]
        %v1093 = vld [vmem:[#allocation14 + $0x30] sm:$0xf]
        %v1094 = vld [vmem:[#allocation14 + $0x34] sm:$0xf]
        %v1095 = vld [vmem:[#allocation14 + $0x38] sm:$0xf]
        %v1096 = vld [vmem:[#allocation14 + $0x3c] sm:$0xf]
        %v1113 = vunpack.c.l.b16 %v1081
        %v1114 = vunpack.c.l.b16 %v1082
        %v1115 = vunpack.c.l.b16 %v1083
        %v1116 = vunpack.c.l.b16 %v1084
        %v1117 = vunpack.c.l.b16 %v1085
        %v1118 = vunpack.c.l.b16 %v1086
        %v1119 = vunpack.c.l.b16 %v1087
        %v1120 = vunpack.c.l.b16 %v1088
        %v1121 = vunpack.c.l.b16 %v1089
        %v1122 = vunpack.c.l.b16 %v1090
        %v1123 = vunpack.c.l.b16 %v1091
        %v1124 = vunpack.c.l.b16 %v1092
        %v1125 = vunpack.c.l.b16 %v1093
        %v1126 = vunpack.c.l.b16 %v1094
        %v1127 = vunpack.c.l.b16 %v1095
        %v1128 = vunpack.c.l.b16 %v1096
        %v1129 = vpack.c.b16 %v1114, %v1113
        %v1130 = vpack.c.b16 %v1116, %v1115
        %v1131 = vpack.c.b16 %v1118, %v1117
        %v1132 = vpack.c.b16 %v1120, %v1119
        %v1133 = vpack.c.b16 %v1122, %v1121
        %v1134 = vpack.c.b16 %v1124, %v1123
        %v1135 = vpack.c.b16 %v1126, %v1125
        %v1136 = vpack.c.b16 %v1128, %v1127
        %1145 = vmatprep.subr.bf16.mxu0 0
        %1146 = vmatpush1.bf16.msra.mxu0 %v1129
        %1147 = vmatprep.subr.bf16.mxu0 0
        %1148 = vmatpush1.bf16.msra.mxu0 %v1130
        %1149 = vmatprep.subr.bf16.mxu0 0
        %1150 = vmatpush1.bf16.msra.mxu0 %v1131
        %1151 = vmatprep.subr.bf16.mxu0 0
        %1152 = vmatpush1.bf16.msra.mxu0 %v1132
        %1153 = vmatprep.subr.bf16.mxu0 0
        %1154 = vmatpush1.bf16.msra.mxu0 %v1133
        %1155 = vmatprep.subr.bf16.mxu0 0
        %1156 = vmatpush1.bf16.msra.mxu0 %v1134
        %1157 = vmatprep.subr.bf16.mxu0 0
        %1158 = vmatpush1.bf16.msra.mxu0 %v1135
        %1159 = vmatprep.subr.bf16.mxu0 0
        %1160 = vmatpush1.bf16.msra.mxu0 %v1136
        %1161 = vmatprep.subr.bf16.mxu0 0
        %1162 = vmatpush1.bf16.msra.mxu0 0
        %1163 = vmatprep.subr.bf16.mxu0 0
        %1164 = vmatpush1.bf16.msra.mxu0 0
        %1165 = vmatprep.subr.bf16.mxu0 0
        %1166 = vmatpush1.bf16.msra.mxu0 0
        %1167 = vmatprep.subr.bf16.mxu0 0
        %1168 = vmatpush1.bf16.msra.mxu0 0
        %1169 = vmatprep.subr.bf16.mxu0 0
        %1170 = vmatpush1.bf16.msra.mxu0 0
        %1171 = vmatprep.subr.bf16.mxu0 0
        %1172 = vmatpush1.bf16.msra.mxu0 0
        %1173 = vmatprep.subr.bf16.mxu0 0
        %1174 = vmatpush1.bf16.msra.mxu0 0
        %1175 = vmatprep.subr.bf16.mxu0 0
        %1176 = vmatpush1.bf16.msra.mxu0 0
        %1177 = vmatprep.mubr.bf16.mxu0 0
        %1178 = vmatmul.mubr.bf16.gmra.mrb[0].mxu0 %v1077
        %v1179 = vpop.f32.mrb[0].mxu0
        %v1180 = vadd.f32 0.0, %v1179
        %v1181 = vpop.f32.mrb[0].mxu0
        %v1182 = vpop.f32.mrb[0].mxu0
        %v1183 = vadd.f32 0.0, %v1182
        %v1184 = vpop.f32.mrb[0].mxu0
        %1185 = vmatprep.mubr.bf16.mxu0 0
        %1186 = vmatmul.mubr.bf16.gmra.mrb[0].mxu0 %v1078
        %v1187 = vpop.f32.mrb[0].mxu0
        %v1188 = vadd.f32 0.0, %v1187
        %v1189 = vpop.f32.mrb[0].mxu0
        %v1190 = vpop.f32.mrb[0].mxu0
        %v1191 = vadd.f32 0.0, %v1190
        %v1192 = vpop.f32.mrb[0].mxu0
        %1193 = vmatprep.mubr.bf16.mxu0 0
        %1194 = vmatmul.mubr.bf16.gmra.mrb[0].mxu0 %v1079
        %v1195 = vpop.f32.mrb[0].mxu0
        %v1196 = vadd.f32 0.0, %v1195
        %v1197 = vpop.f32.mrb[0].mxu0
        %v1198 = vpop.f32.mrb[0].mxu0
        %v1199 = vadd.f32 0.0, %v1198
        %v1200 = vpop.f32.mrb[0].mxu0
        %1201 = vmatprep.mubr.bf16.mxu0 0
        %1202 = vmatmul.mubr.bf16.gmra.mrb[0].mxu0 %v1080
        %v1203 = vpop.f32.mrb[0].mxu0
        %v1204 = vadd.f32 0.0, %v1203
        %v1205 = vpop.f32.mrb[0].mxu0
        %v1206 = vpop.f32.mrb[0].mxu0
        %v1207 = vadd.f32 0.0, %v1206
        %v1208 = vpop.f32.mrb[0].mxu0
        %1209 = vdwg.mxu0
        %v1210 = vadd.f32 %v682, %v1180
        %v1211 = vadd.f32 %v683, %v1183
        %v1212 = vadd.f32 %v684, %v1188
        %v1213 = vadd.f32 %v685, %v1191
        %v1214 = vadd.f32 %v686, %v1196
        %v1215 = vadd.f32 %v687, %v1199
        %v1216 = vadd.f32 %v688, %v1204
        %v1217 = vadd.f32 %v689, %v1207
        %v1218 = vld [vmem:[#allocation15] sm:$0x1]
        %v1220 = vlaneseq
        %v1221 = vshrl.u32 %v1220, 7
        %v1222 = vsub.s32 0, %v1221
        %v1223 = vrot.slane %v1218, %v1222
        %v1225 = vadd.f32 %v1210, %v1223
        %v1226 = vadd.f32 %v1211, %v1223
        %v1227 = vadd.f32 %v1212, %v1223
        %v1228 = vadd.f32 %v1213, %v1223
        %v1229 = vadd.f32 %v1214, %v1223
        %v1230 = vadd.f32 %v1215, %v1223
        %v1231 = vadd.f32 %v1216, %v1223
        %v1232 = vadd.f32 %v1217, %v1223
        %1233 = vst [vmem:[%s445] sm:$0xff] %v1225
        %1234 = vst [vmem:[%s445 + $0x8] sm:$0xff] %v1226
        %1235 = vst [vmem:[%s445 + $0x10] sm:$0xff] %v1227
        %1236 = vst [vmem:[%s445 + $0x18] sm:$0xff] %v1228
        %1237 = vst [vmem:[%s445 + $0x20] sm:$0xff] %v1229
        %1238 = vst [vmem:[%s445 + $0x28] sm:$0xff] %v1230
        %1239 = vst [vmem:[%s445 + $0x30] sm:$0xff] %v1231
        %1240 = vst [vmem:[%s445 + $0x38] sm:$0xff] %v1232
        %s1241 = sand.u32 %s231, 1
        %s1242 = scalar_lea.sflag [#allocation5], %s1241
        %s1243 = sand.u32 %s231, 1
        %s1244 = smul.addr %s1243, 64
        %s1245 = scalar_lea.vmem [#allocation17], %s1244
        // Predicated region
        $region89: #{tpu_custom_call.1} parent=51 // pred_check
          %p1246 = pneg %p241
        $region90: #{tpu_custom_call.1} parent=51 // pred_check_branch
          %1248 = sbr.rel (%p1246) target = $region92
        $region91: #{tpu_custom_call.1} parent=51 // pred_region
          %s1249 = smul.u32 8, %s34
          %s1251 = ssub.s32 1024, 1024
          %1252 = vsyncadd %s1242, %s1251
          %s1253 = smul.addr %s33, 8
          %s1254 = sadd.s32 %s1249, %s1253
          %s1255 = smul.addr %s1254, 128
          %s1256 = scalar_lea.hbm %s8, %s1255
          %s1257 = sshll.u32 %s1245, 4
          %s1258 = int_to_ptr.vmem [resolvable:$true] %s1257
          %1263 = dma.vmem_to_hbm [thread:$0]  %s1258, 1024, %s1256, %s1242, 128, 128, 8
        $region92: #{tpu_custom_call.1} parent=51 // pred_fallthru
          _
      $region52: #{tpu_custom_call.1} parent=5 // pred_fallthru
        _
      %p1264 = scmp.le.s32.totalorder 2, %s24
      // Predicated region
      $region93: #{tpu_custom_call.1} parent=5 // pred_check
        %p1265 = pneg %p1264
      $region94: #{tpu_custom_call.1} parent=5 // pred_check_branch
        %1267 = sbr.rel (%p1265) target = $region96
      $region95: #{tpu_custom_call.1} parent=5 // pred_region
        %s1268 = ssub.s32 %s24, 2
        // Predicated region
        $region97: #{tpu_custom_call.1} parent=95 // pred_check
          %p1269 = pneg %p247
        $region98: #{tpu_custom_call.1} parent=95 // pred_check_branch
          %1271 = sbr.rel (%p1269) target = $region100
        $region99: #{tpu_custom_call.1} parent=95 // pred_region
          %s1272 = sand.u32 %s232, 1
          %s1273 = scalar_lea.sflag [#allocation5], %s1272
          %s1274 = sand.u32 %s232, 1
          %s1275 = smul.addr %s1274, 64
          %s1276 = scalar_lea.vmem [#allocation17], %s1275
          %1277 = dma.done %s1273, 1024
        $region100: #{tpu_custom_call.1} parent=95 // pred_fallthru
          _
      $region96: #{tpu_custom_call.1} parent=5 // pred_fallthru
        _
    $region6: #{tpu_custom_call.1} parent=1 // loop_footer
      %s28 = sadd.s32 1, %s24
    $region7: #{tpu_custom_call.1} parent=1 // loop_footer_branch
      %23 = sbr.rel target = $region3
    $region8: #{tpu_custom_call.1} parent=1 // loop_exit
      _
    %1278 = vsyncpa [#allocation4], 1
    %s1279 = scalar_lea.sflag [#allocation4], 1
    %1280 = vsyncpa %s1279, 1
    %1281 = vsyncpa [#allocation7], 1
    %1282 = vsyncpa [#allocation10], 1
    %1283 = vsyncpa [#allocation13], 1
    %1284 = vsyncpa [#allocation16], 1
    %1285 = vsyncpa [#allocation5], 1
    %s1286 = scalar_lea.sflag [#allocation5], 1
    %1287 = vsyncpa %s1286, 1

</llo_original>
